<compile_context>
chip_gen: v7x
topology: tpu7x:2x2x1
jax: 0.10.0
libtpu: 0.0.40
codegen_flags: <defaults>
</compile_context>

<pallas_src>
import jax
import jax.numpy as jnp
from jax.experimental import pallas as pl
from jax.experimental.pallas import tpu as pltpu


_C_IN = 512
_C_HID = 512
_LANE = 128    # pad C_out up to a lane-dense multiple of this
_TS_MAX = 512  # max seed-tile width (lanes per grid step)


def _round_up(x, m):
    return (x + m - 1) // m * m


def _swad_kernel(x_ref, w1_ref, b1_ref, w2_ref, b2_ref, out_ref):
    # x_ref : (1, C_in, TS)        f32 activation tile (NCW slab, seeds on lanes)
    # w1_ref: (C_hid, C_in)        bf16
    # b1_ref: (C_hid, 1)           f32
    # w2_ref: (C_out_pad, C_hid)   bf16
    # b2_ref: (C_out_pad, 1)       f32
    # out   : (1, C_out_pad, TS)   f32
    x = x_ref[0].astype(jnp.bfloat16)                                 # (C_in, TS)
    h = jnp.dot(w1_ref[...], x, preferred_element_type=jnp.float32)   # (C_hid, TS)
    h = jnp.maximum(h + b1_ref[...], 0.0)                             # bias + ReLU, f32
    y = jnp.dot(w2_ref[...], h.astype(jnp.bfloat16),
                preferred_element_type=jnp.float32)                   # (C_out_pad, TS)
    out_ref[0] = (y + b2_ref[...]).astype(out_ref.dtype)


def swad_pallas(x_ncw, w1_bf16, b1_col, w2p_bf16, b2p_col, ts):
    """x_ncw: (B, C_in, S_pad) f32 with S_pad % ts == 0.
    Returns (B, C_out_pad, S_pad) f32."""
    B, C_in, S_pad = x_ncw.shape
    C_hid = w1_bf16.shape[0]
    C_out_pad = w2p_bf16.shape[0]
    n_s = S_pad // ts

    flops = 2 * B * S_pad * (C_in * C_hid + C_hid * C_out_pad)
    bytes_accessed = (
        x_ncw.size * 4 + B * C_out_pad * S_pad * 4        # f32 activations in / out
        + w1_bf16.size * 2 + w2p_bf16.size * 2            # bf16 weights (once)
        + b1_col.size * 4 + b2p_col.size * 4
    )

    return pl.pallas_call(
        _swad_kernel,
        out_shape=jax.ShapeDtypeStruct((B, C_out_pad, S_pad), jnp.float32),
        grid_spec=pltpu.PrefetchScalarGridSpec(
            num_scalar_prefetch=0,
            grid=(B, n_s),
            in_specs=[
                pl.BlockSpec((1, C_in, ts), lambda b, s: (b, 0, s)),
                pl.BlockSpec((C_hid, C_in), lambda b, s: (0, 0)),      # resident
                pl.BlockSpec((C_hid, 1), lambda b, s: (0, 0)),         # resident
                pl.BlockSpec((C_out_pad, C_hid), lambda b, s: (0, 0)), # resident
                pl.BlockSpec((C_out_pad, 1), lambda b, s: (0, 0)),     # resident
            ],
            out_specs=pl.BlockSpec((1, C_out_pad, ts), lambda b, s: (b, 0, s)),
        ),
        compiler_params=pltpu.CompilerParams(
            dimension_semantics=("parallel", "parallel"),
        ),
        cost_estimate=pl.CostEstimate(
            flops=flops, transcendentals=0, bytes_accessed=bytes_accessed),
    )(x_ncw, w1_bf16, b1_col, w2p_bf16, b2p_col)


def preprocess_params(params, num_angle, num_depth):
    """One-time preprocessing for frozen inference weights:
    squeeze the 1x1 kernel dim, zero-pad C_out to a lane-dense width,
    cast weights to bf16 (f32 accumulate in-kernel), biases as (C, 1) f32."""
    c_out = 2 * num_angle * num_depth
    c_out_pad = _round_up(max(c_out, _LANE), _LANE)

    w1 = params["conv1_w"][:, :, 0]                      # (C_hid, C_in), matmul-ready
    w2 = params["conv_swad_w"][:, :, 0]                  # (C_out, C_hid)
    w2p = jnp.zeros((c_out_pad, w2.shape[1]), jnp.float32).at[:c_out].set(w2)
    b2p = jnp.zeros((c_out_pad,), jnp.float32).at[:c_out].set(params["conv_swad_b"])

    return {
        "w1": w1.astype(jnp.bfloat16),
        "b1": params["conv1_b"].reshape(-1, 1).astype(jnp.float32),
        "w2": w2p.astype(jnp.bfloat16),
        "b2": b2p.reshape(-1, 1).astype(jnp.float32),
        "c_out": c_out,
    }


def swad_forward(vp_features, prep, num_angle, num_depth, end_points=None):
    """vp_features: (B, 512, num_seed) f32 — PyTorch NCW convention.
    prep: output of preprocess_params (computed once)."""
    if end_points is None:
        end_points = {}
    B, _, num_seed = vp_features.shape
    c_out = prep["c_out"]

    # Adaptive seed tile: big enough to fill lanes, small enough to avoid
    # padding waste at toy sizes; pad the seed axis to a multiple of it.
    ts = min(_TS_MAX, _round_up(max(num_seed, _LANE), _LANE))
    s_pad = _round_up(num_seed, ts)
    if s_pad != num_seed:
        vp_features = jnp.pad(
            vp_features, ((0, 0), (0, 0), (0, s_pad - num_seed)))

    y = swad_pallas(vp_features, prep["w1"], prep["b1"], prep["w2"], prep["b2"], ts)
    y = y[:, :c_out, :num_seed]                  # drop C_out + seed padding

    # Exactly PyTorch: view(B, 2, A, D, S).permute(0, 1, 4, 2, 3) -> (B, 2, S, A, D)
    y = y.reshape(B, 2, num_angle, num_depth, num_seed)
    y = jnp.transpose(y, (0, 1, 4, 2, 3))

    end_points["grasp_score_pred"] = y[:, 0]
    end_points["grasp_width_pred"] = y[:, 1]
    return end_points


def init_params(key, num_angle, num_depth):
    c_in, c_hid = _C_IN, _C_HID
    c_out = 2 * num_angle * num_depth
    k1, k2, k3, k4 = jax.random.split(key, 4)
    s1 = (1.0 / c_in) ** 0.5
    s2 = (1.0 / c_hid) ** 0.5
    return {
        "conv1_w": jax.random.uniform(k1, (c_hid, c_in, 1), jnp.float32, -s1, s1),
        "conv1_b": jax.random.uniform(k2, (c_hid,), jnp.float32, -s1, s1),
        "conv_swad_w": jax.random.uniform(k3, (c_out, c_hid, 1), jnp.float32, -s2, s2),
        "conv_swad_b": jax.random.uniform(k4, (c_out,), jnp.float32, -s2, s2),
    }


def _swad_reference(vp_features, params, num_angle, num_depth):
    """Pure-JAX f32 reference mirroring the PyTorch module."""
    w1 = params["conv1_w"][:, :, 0]
    w2 = params["conv_swad_w"][:, :, 0]
    h = jnp.einsum("oc,bcs->bos", w1, vp_features) + params["conv1_b"][None, :, None]
    h = jnp.maximum(h, 0.0)
    y = jnp.einsum("oc,bcs->bos", w2, h) + params["conv_swad_b"][None, :, None]
    B, _, S = vp_features.shape
    y = y.reshape(B, 2, num_angle, num_depth, S)
    y = jnp.transpose(y, (0, 1, 4, 2, 3))
    return y[:, 0], y[:, 1]


if __name__ == "__main__":
    key = jax.random.PRNGKey(0)
    num_angle, num_depth = 4, 4          # small synthetic config -> C_out = 32
    B, C, num_seed = 2, _C_IN, 8         # C=512 fixed by the module

    kp, kx = jax.random.split(key)
    params = init_params(kp, num_angle, num_depth)
    vp_features = jax.random.normal(kx, (B, C, num_seed), jnp.float32)

    prep = preprocess_params(params, num_angle, num_depth)   # one-time, frozen weights

    end_points = swad_forward(vp_features, prep, num_angle, num_depth)
    score = jax.block_until_ready(end_points["grasp_score_pred"])
    width = jax.block_until_ready(end_points["grasp_width_pred"])

    # shapes must match PyTorch semantics: (B, num_seed, A, D)
    assert score.shape == (B, num_seed, num_angle, num_depth)
    assert width.shape == (B, num_seed, num_angle, num_depth)

    # numerical sanity vs f32 reference (bf16 MXU inputs, f32 accumulate)
    ref_score, ref_width = _swad_reference(vp_features, params, num_angle, num_depth)
    assert jnp.allclose(score, ref_score, atol=1e-1, rtol=1e-1)
    assert jnp.allclose(width, ref_width, atol=1e-1, rtol=1e-1)

    print("KERNEL_OK")
</pallas_src>

<mosaic_0001>
module attributes {stable_mosaic.version = 11 : i64} {
  func.func @_swad_kernel(%arg0: i32, %arg1: i32, %arg2: memref<1x512x128xf32, #tpu.memory_space<vmem>>, %arg3: memref<512x512xbf16, #tpu.memory_space<vmem>>, %arg4: memref<512x1xf32, #tpu.memory_space<vmem>>, %arg5: memref<128x512xbf16, #tpu.memory_space<vmem>>, %arg6: memref<128x1xf32, #tpu.memory_space<vmem>>, %arg7: memref<1x128x128xf32, #tpu.memory_space<vmem>>) attributes {dimension_semantics = [#tpu.dimension_semantics<parallel>, #tpu.dimension_semantics<parallel>], iteration_bounds = array<i64: 2, 1>, scalar_prefetch = 0 : i64, scratch_operands = 0 : i64, tpu.core_type = #tpu.core_type<tc>, window_params = [{transform_indices = @transform_0, window_bounds = array<i64: 1, 512, 128>}, {pipeline_mode = #tpu.pipeline_mode<synchronous>, transform_indices = @transform_1, window_bounds = array<i64: 512, 512>}, {pipeline_mode = #tpu.pipeline_mode<synchronous>, transform_indices = @transform_2, window_bounds = array<i64: 512, 1>}, {pipeline_mode = #tpu.pipeline_mode<synchronous>, transform_indices = @transform_3, window_bounds = array<i64: 128, 512>}, {pipeline_mode = #tpu.pipeline_mode<synchronous>, transform_indices = @transform_4, window_bounds = array<i64: 128, 1>}, {transform_indices = @transform_5, window_bounds = array<i64: 1, 128, 128>}]} {
    %c0 = arith.constant 0 : index
    %c0_0 = arith.constant 0 : index
    %c0_1 = arith.constant 0 : index
    %0 = vector.load %arg2[%c0, %c0_0, %c0_1] : memref<1x512x128xf32, #tpu.memory_space<vmem>>, vector<1x512x128xf32>
    %1 = vector.shape_cast %0 : vector<1x512x128xf32> to vector<512x128xf32>
    %2 = arith.truncf %1 : vector<512x128xf32> to vector<512x128xbf16>
    %c0_2 = arith.constant 0 : index
    %c0_3 = arith.constant 0 : index
    %3 = vector.load %arg3[%c0_2, %c0_3] : memref<512x512xbf16, #tpu.memory_space<vmem>>, vector<512x512xbf16>
    %cst = arith.constant dense<0.000000e+00> : vector<512x128xf32>
    %4 = tpu.matmul %3, %2, %cst {dimension_numbers = #tpu.dot_dimension_numbers<[1], [0], [0], [1], [0, 0, 1, 1], [], []>} : vector<512x512xbf16>, vector<512x128xbf16>, vector<512x128xf32> -> vector<512x128xf32>
    %c0_4 = arith.constant 0 : index
    %c0_5 = arith.constant 0 : index
    %5 = vector.load %arg4[%c0_4, %c0_5] : memref<512x1xf32, #tpu.memory_space<vmem>>, vector<512x1xf32>
    %6 = vector.broadcast %5 : vector<512x1xf32> to vector<512x128xf32>
    %7 = arith.addf %4, %6 : vector<512x128xf32>
    %cst_6 = arith.constant 0.000000e+00 : f32
    %8 = vector.broadcast %cst_6 : f32 to vector<512x128xf32>
    %9 = arith.maximumf %7, %8 : vector<512x128xf32>
    %c0_7 = arith.constant 0 : index
    %c0_8 = arith.constant 0 : index
    %10 = vector.load %arg5[%c0_7, %c0_8] : memref<128x512xbf16, #tpu.memory_space<vmem>>, vector<128x512xbf16>
    %11 = arith.truncf %9 : vector<512x128xf32> to vector<512x128xbf16>
    %cst_9 = arith.constant dense<0.000000e+00> : vector<128x128xf32>
    %12 = tpu.matmul %10, %11, %cst_9 {dimension_numbers = #tpu.dot_dimension_numbers<[1], [0], [0], [1], [0, 0, 1, 1], [], []>} : vector<128x512xbf16>, vector<512x128xbf16>, vector<128x128xf32> -> vector<128x128xf32>
    %c0_10 = arith.constant 0 : index
    %c0_11 = arith.constant 0 : index
    %13 = vector.load %arg6[%c0_10, %c0_11] : memref<128x1xf32, #tpu.memory_space<vmem>>, vector<128x1xf32>
    %14 = vector.broadcast %13 : vector<128x1xf32> to vector<128x128xf32>
    %15 = arith.addf %12, %14 : vector<128x128xf32>
    %c0_12 = arith.constant 0 : index
    %c0_13 = arith.constant 0 : index
    %c0_14 = arith.constant 0 : index
    %16 = vector.load %arg7[%c0_12, %c0_13, %c0_14] : memref<1x128x128xf32, #tpu.memory_space<vmem>>, vector<1x128x128xf32>
    %17 = vector.shape_cast %16 : vector<1x128x128xf32> to vector<128x128xf32>
    %18 = vector.shape_cast %15 : vector<128x128xf32> to vector<1x128x128xf32>
    tpu.vector_store %arg7[%c0_12, %c0_13, %c0_14], %18 {strides = array<i32>} : memref<1x128x128xf32, #tpu.memory_space<vmem>>, vector<1x128x128xf32>,
    return
  }
  func.func @transform_0(%arg0: i32, %arg1: i32) -> (i32, i32, i32) {
    %c0_i32 = arith.constant 0 : i32
    %c0_i32_0 = arith.constant 0 : i32
    return %arg0, %c0_i32, %arg1 : i32, i32, i32
  }
  func.func @transform_1(%arg0: i32, %arg1: i32) -> (i32, i32) {
    %c0_i32 = arith.constant 0 : i32
    %c0_i32_0 = arith.constant 0 : i32
    %c0_i32_1 = arith.constant 0 : i32
    return %c0_i32, %c0_i32_0 : i32, i32
  }
  func.func @transform_2(%arg0: i32, %arg1: i32) -> (i32, i32) {
    %c0_i32 = arith.constant 0 : i32
    %c0_i32_0 = arith.constant 0 : i32
    %c0_i32_1 = arith.constant 0 : i32
    return %c0_i32, %c0_i32_0 : i32, i32
  }
  func.func @transform_3(%arg0: i32, %arg1: i32) -> (i32, i32) {
    %c0_i32 = arith.constant 0 : i32
    %c0_i32_0 = arith.constant 0 : i32
    %c0_i32_1 = arith.constant 0 : i32
    return %c0_i32, %c0_i32_0 : i32, i32
  }
  func.func @transform_4(%arg0: i32, %arg1: i32) -> (i32, i32) {
    %c0_i32 = arith.constant 0 : i32
    %c0_i32_0 = arith.constant 0 : i32
    %c0_i32_1 = arith.constant 0 : i32
    return %c0_i32, %c0_i32_0 : i32, i32
  }
  func.func @transform_5(%arg0: i32, %arg1: i32) -> (i32, i32, i32) {
    %c0_i32 = arith.constant 0 : i32
    %c0_i32_0 = arith.constant 0 : i32
    return %arg0, %c0_i32, %arg1 : i32, i32, i32
  }
}

</mosaic_0001>

<llo_original>
// kernel: tpu_custom_call.1
$region0: #{tpu_custom_call.1}
  #allocation0 [shape = 'u32[]', space=smem, size = 0x4, offset = 0x4, fixed_abs, tag = 'smem constant byte address 0x4 - core index']
  #allocation1 [shape = 'u32[144,128]{1,0:T(1,128)}', space=vmem, size = 0x12000, scoped, tag = 'internal scratch']
  %s0 = inlined_call_operand.hbm [shape: f32[2,512,128], index: 0, kind: input, shape index: {}]
  %s1 = inlined_call_operand.hbm [shape: bf16[512,512], index: 1, kind: input, shape index: {}]
  %s2 = inlined_call_operand.vmem [shape: f32[512,1], index: 2, kind: input, shape index: {}]
  %s3 = inlined_call_operand.vmem [shape: bf16[128,512], index: 3, kind: input, shape index: {}]
  %s4 = inlined_call_operand.vmem [shape: f32[128,1], index: 4, kind: input, shape index: {}]
  %s5 = inlined_call_operand.hbm [shape: f32[2,128,128], index: 5, kind: output, shape index: {}]
  %s6 = sld [smem:[#allocation0]]
  $region61: #{tpu_custom_call.1} parent=0
    _
  %s8 = ssub.s32 1, %s6
  %s9 = scalar_select 0, %s8, %s6
  $region1: #{tpu_custom_call.1} parent=0
    #allocation2 [shape = 'u8[524288]{0}', space=vmem, size = 0x80000, scoped, tag = 'input window, operand 0']
    #allocation3 [shape = 's32[2]{0}', space=sflag, size = 0x8, scoped, tag = 'scoped memory for tpu_custom_call.1']
    #allocation4 [shape = 's32[2]{0}', space=sflag, size = 0x8, scoped, tag = 'scoped memory for tpu_custom_call.1']
    #allocation5 [shape = 'u8[524288]{0}', space=vmem, size = 0x80000, scoped, tag = 'input window, operand 1, single buffered']
    #allocation6 [shape = 's32[1]{0}', space=sflag, size = 0x4, scoped, tag = 'scoped memory for tpu_custom_call.1']
    #allocation7 [shape = 'u8[131072]{0}', space=vmem, size = 0x20000, scoped, tag = 'output window, operand 0']
    %10 = vsyncpa [#allocation3], 0
    %s11 = scalar_lea.sflag [#allocation3], 1
    %12 = vsyncpa %s11, 0
    %13 = vsyncpa [#allocation6], 0
    %14 = vsyncpa [#allocation4], 0
    %s15 = scalar_lea.sflag [#allocation4], 1
    %16 = vsyncpa %s15, 0
    loop: start=0, step=1, limit=4
    $region2: #{tpu_custom_call.1} parent=1 // loop_pre_header
      _
    $region3: #{tpu_custom_call.1} parent=1 // loop_header
      %s18 = sphi 0, %s22
      %p19 = scmp.ge.s32.totalorder %s18, 4
      %s25 = sphi 0, %s37
      %s26 = sphi 0, %s33
      %s27 = sphi 0, %s25
      %s28 = sphi 0, %s26
      %s29 = sphi 0, %s27
      %s30 = sphi 0, %s28
      %s42 = sphi 0, %s44
      %s45 = sphi 0, %s42
      %s46 = sphi 0, %s45
      %s62 = sphi 0, %s46
      %s66 = sphi 0, %s66
      %s68 = sphi 0, %s66
      %s69 = sphi 0, %s68
      %s83 = sphi 0, %s69
      %s87 = sphi 0, %s87
      %s89 = sphi 0, %s87
      %s90 = sphi 0, %s89
      %s104 = sphi 0, %s90
      %s108 = sphi 0, %s108
      %s110 = sphi 0, %s108
      %s111 = sphi 0, %s110
      %s125 = sphi 0, %s111
      %s129 = sphi 0, %s129
      %s131 = sphi 0, %s129
      %s132 = sphi 0, %s131
      %s146 = sphi 0, %s132
      %s154 = sphi 0, %s156
      %s157 = sphi 0, %s154
      %s158 = sphi 0, %s157
      %s174 = sphi 0, %s158
    $region4: #{tpu_custom_call.1} parent=1 // loop_header_branch
      %21 = sbr.rel (%p19) target = $region8
    $region5: #{tpu_custom_call.1} parent=1 // loop_body
      %s23 = ssub.s32 %s18, 1
      %s24 = ssub.s32 %s18, 2
      %s31 = sadd.s32 1, %s26
      %p32 = scmp.ge.s32.totalorder %s31, 1
      %s33 = scalar_select %p32, 0, %s31
      %s34 = sadd.s32 1, %s25
      %s35 = scalar_select %p32, %s34, %s25
      %p36 = scmp.ge.s32.totalorder %s35, 2
      %s37 = scalar_select %p36, 0, %s35
      %s38 = ssub.s32 %s25, %s37
      %s39 = ssub.s32 %s26, %s33
      %s40 = sor.u32 %s38, %s39
      %p41 = scmp.eq.s32.totalorder %s40, 0
      %s43 = sadd.s32 %s42, 1
      %s44 = scalar_select %p41, %s42, %s43
      %p47 = pneg %p41
      %p48 = scmp.eq.s32.totalorder %s18, 1
      %p49 = por %p47, %p48
      %p50 = scmp.ne.s32.totalorder %s42, %s45
      %p51 = scmp.eq.s32.totalorder %s18, 0
      %p52 = por %p50, %p51
      %p53 = scmp.ne.s32.totalorder %s42, %s45
      %p54 = scmp.eq.s32.totalorder %s23, 1
      %p55 = por %p53, %p54
      %p56 = scmp.ne.s32.totalorder %s45, %s46
      %p57 = scmp.eq.s32.totalorder %s23, 0
      %p58 = por %p56, %p57
      %p59 = scmp.ne.s32.totalorder %s45, %s46
      %p60 = scmp.eq.s32.totalorder %s24, 1
      %p61 = por %p59, %p60
      %p63 = scmp.ne.s32.totalorder %s46, %s62
      %p64 = scmp.eq.s32.totalorder %s24, 0
      %p65 = por %p63, %p64
      %s67 = sadd.s32 %s66, 1
      %p70 = scmp.eq.s32.totalorder %s18, 1
      %p71 = scmp.ne.s32.totalorder %s66, %s68
      %p72 = scmp.eq.s32.totalorder %s18, 0
      %p73 = por %p71, %p72
      %p74 = scmp.ne.s32.totalorder %s66, %s68
      %p75 = scmp.eq.s32.totalorder %s23, 1
      %p76 = por %p74, %p75
      %p77 = scmp.ne.s32.totalorder %s68, %s69
      %p78 = scmp.eq.s32.totalorder %s23, 0
      %p79 = por %p77, %p78
      %p80 = scmp.ne.s32.totalorder %s68, %s69
      %p81 = scmp.eq.s32.totalorder %s24, 1
      %p82 = por %p80, %p81
      %p84 = scmp.ne.s32.totalorder %s69, %s83
      %p85 = scmp.eq.s32.totalorder %s24, 0
      %p86 = por %p84, %p85
      %s88 = sadd.s32 %s87, 1
      %p91 = scmp.eq.s32.totalorder %s18, 1
      %p92 = scmp.ne.s32.totalorder %s87, %s89
      %p93 = scmp.eq.s32.totalorder %s18, 0
      %p94 = por %p92, %p93
      %p95 = scmp.ne.s32.totalorder %s87, %s89
      %p96 = scmp.eq.s32.totalorder %s23, 1
      %p97 = por %p95, %p96
      %p98 = scmp.ne.s32.totalorder %s89, %s90
      %p99 = scmp.eq.s32.totalorder %s23, 0
      %p100 = por %p98, %p99
      %p101 = scmp.ne.s32.totalorder %s89, %s90
      %p102 = scmp.eq.s32.totalorder %s24, 1
      %p103 = por %p101, %p102
      %p105 = scmp.ne.s32.totalorder %s90, %s104
      %p106 = scmp.eq.s32.totalorder %s24, 0
      %p107 = por %p105, %p106
      %s109 = sadd.s32 %s108, 1
      %p112 = scmp.eq.s32.totalorder %s18, 1
      %p113 = scmp.ne.s32.totalorder %s108, %s110
      %p114 = scmp.eq.s32.totalorder %s18, 0
      %p115 = por %p113, %p114
      %p116 = scmp.ne.s32.totalorder %s108, %s110
      %p117 = scmp.eq.s32.totalorder %s23, 1
      %p118 = por %p116, %p117
      %p119 = scmp.ne.s32.totalorder %s110, %s111
      %p120 = scmp.eq.s32.totalorder %s23, 0
      %p121 = por %p119, %p120
      %p122 = scmp.ne.s32.totalorder %s110, %s111
      %p123 = scmp.eq.s32.totalorder %s24, 1
      %p124 = por %p122, %p123
      %p126 = scmp.ne.s32.totalorder %s111, %s125
      %p127 = scmp.eq.s32.totalorder %s24, 0
      %p128 = por %p126, %p127
      %s130 = sadd.s32 %s129, 1
      %p133 = scmp.eq.s32.totalorder %s18, 1
      %p134 = scmp.ne.s32.totalorder %s129, %s131
      %p135 = scmp.eq.s32.totalorder %s18, 0
      %p136 = por %p134, %p135
      %p137 = scmp.ne.s32.totalorder %s129, %s131
      %p138 = scmp.eq.s32.totalorder %s23, 1
      %p139 = por %p137, %p138
      %p140 = scmp.ne.s32.totalorder %s131, %s132
      %p141 = scmp.eq.s32.totalorder %s23, 0
      %p142 = por %p140, %p141
      %p143 = scmp.ne.s32.totalorder %s131, %s132
      %p144 = scmp.eq.s32.totalorder %s24, 1
      %p145 = por %p143, %p144
      %p147 = scmp.ne.s32.totalorder %s132, %s146
      %p148 = scmp.eq.s32.totalorder %s24, 0
      %p149 = por %p147, %p148
      %s150 = ssub.s32 %s25, %s37
      %s151 = ssub.s32 %s26, %s33
      %s152 = sor.u32 %s150, %s151
      %p153 = scmp.eq.s32.totalorder %s152, 0
      %s155 = sadd.s32 %s154, 1
      %s156 = scalar_select %p153, %s154, %s155
      %p159 = pneg %p153
      %p160 = scmp.eq.s32.totalorder %s18, 1
      %p161 = por %p159, %p160
      %p162 = scmp.ne.s32.totalorder %s154, %s157
      %p163 = scmp.eq.s32.totalorder %s18, 0
      %p164 = por %p162, %p163
      %p165 = scmp.ne.s32.totalorder %s154, %s157
      %p166 = scmp.eq.s32.totalorder %s23, 1
      %p167 = por %p165, %p166
      %p168 = scmp.ne.s32.totalorder %s157, %s158
      %p169 = scmp.eq.s32.totalorder %s23, 0
      %p170 = por %p168, %p169
      %p171 = scmp.ne.s32.totalorder %s157, %s158
      %p172 = scmp.eq.s32.totalorder %s24, 1
      %p173 = por %p171, %p172
      %p175 = scmp.ne.s32.totalorder %s158, %s174
      %p176 = scmp.eq.s32.totalorder %s24, 0
      %p177 = por %p175, %p176
      %p178 = scmp.le.s32.totalorder 1, %s18
      %p179 = scmp.lt.s32.totalorder %s18, 3
      %p180 = pnand %p178, %p179
      %p181 = pneg %p180
      // Predicated region
      $region9: #{tpu_custom_call.1} parent=5 // pred_check
        _
      $region10: #{tpu_custom_call.1} parent=5 // pred_check_branch
        %183 = sbr.rel (%p180) target = $region12
      $region11: #{tpu_custom_call.1} parent=5 // pred_region
        %s184 = ssub.s32 %s18, 1
        // Predicated region
        $region13: #{tpu_custom_call.1} parent=11 // pred_check
          %p185 = pneg %p79
        $region14: #{tpu_custom_call.1} parent=11 // pred_check_branch
          %187 = sbr.rel (%p185) target = $region16
        $region15: #{tpu_custom_call.1} parent=11 // pred_region
          %s189 = ssub.s32 16384, 16384
          %190 = vsyncadd [#allocation6], %s189
          %s191 = sshll.u32 [#allocation5], 4
          %s192 = int_to_ptr.vmem [resolvable:$true] %s191
          %197 = dma.hbm_to_vmem [thread:$0]  %s1, 16384, %s192, [#allocation6], 256, 256, 16
        $region16: #{tpu_custom_call.1} parent=11 // pred_fallthru
          _
        // Predicated region
        $region17: #{tpu_custom_call.1} parent=11 // pred_check
          %p198 = pneg %p100
        $region18: #{tpu_custom_call.1} parent=11 // pred_check_branch
          %200 = sbr.rel (%p198) target = $region20
        $region19: #{tpu_custom_call.1} parent=11 // pred_region
          _
        $region20: #{tpu_custom_call.1} parent=11 // pred_fallthru
          _
        // Predicated region
        $region21: #{tpu_custom_call.1} parent=11 // pred_check
          %p201 = pneg %p121
        $region22: #{tpu_custom_call.1} parent=11 // pred_check_branch
          %203 = sbr.rel (%p201) target = $region24
        $region23: #{tpu_custom_call.1} parent=11 // pred_region
          _
        $region24: #{tpu_custom_call.1} parent=11 // pred_fallthru
          _
        // Predicated region
        $region25: #{tpu_custom_call.1} parent=11 // pred_check
          %p204 = pneg %p142
        $region26: #{tpu_custom_call.1} parent=11 // pred_check_branch
          %206 = sbr.rel (%p204) target = $region28
        $region27: #{tpu_custom_call.1} parent=11 // pred_region
          _
        $region28: #{tpu_custom_call.1} parent=11 // pred_fallthru
          _
      $region12: #{tpu_custom_call.1} parent=5 // pred_fallthru
        _
      %p207 = scmp.lt.s32.totalorder %s18, 2
      // Predicated region
      $region29: #{tpu_custom_call.1} parent=5 // pred_check
        %p208 = pneg %p207
      $region30: #{tpu_custom_call.1} parent=5 // pred_check_branch
        %210 = sbr.rel (%p208) target = $region32
      $region31: #{tpu_custom_call.1} parent=5 // pred_region
        // Predicated region
        $region33: #{tpu_custom_call.1} parent=31 // pred_check
          %p211 = pneg %p52
        $region34: #{tpu_custom_call.1} parent=31 // pred_check_branch
          %213 = sbr.rel (%p211) target = $region36
        $region35: #{tpu_custom_call.1} parent=31 // pred_region
          %s214 = sand.u32 %s42, 1
          %s215 = scalar_lea.sflag [#allocation3], %s214
          %s216 = sand.u32 %s42, 1
          %s217 = smul.addr %s216, 512
          %s218 = scalar_lea.vmem [#allocation2], %s217
          %s220 = ssub.s32 8192, 8192
          %221 = vsyncadd %s215, %s220
          %s222 = smul.addr %s25, 64
          %s223 = sadd.s32 %s26, %s222
          %s224 = smul.addr %s223, 128
          %s225 = scalar_lea.hbm %s0, %s224
          %s226 = sshll.u32 %s218, 4
          %s227 = int_to_ptr.vmem [resolvable:$true] %s226
          %232 = dma.hbm_to_vmem [thread:$0]  %s225, 8192, %s227, %s215, 128, 128, 8
        $region36: #{tpu_custom_call.1} parent=31 // pred_fallthru
          _
      $region32: #{tpu_custom_call.1} parent=5 // pred_fallthru
        _
      %p233 = scmp.le.s32.totalorder 1, %s18
      %p234 = scmp.lt.s32.totalorder %s18, 3
      %p235 = pnand %p233, %p234
      %p236 = pneg %p235
      // Predicated region
      $region37: #{tpu_custom_call.1} parent=5 // pred_check
        _
      $region38: #{tpu_custom_call.1} parent=5 // pred_check_branch
        %238 = sbr.rel (%p235) target = $region40
      $region39: #{tpu_custom_call.1} parent=5 // pred_region
        %s239 = ssub.s32 %s18, 1
        %s240 = sand.u32 %s45, 1
        %s241 = scalar_lea.sflag [#allocation3], %s240
        %s242 = sand.u32 %s45, 1
        %s243 = smul.addr %s242, 512
        %s244 = scalar_lea.vmem [#allocation2], %s243
        // Predicated region
        $region41: #{tpu_custom_call.1} parent=39 // pred_check
          %p245 = pneg %p58
        $region42: #{tpu_custom_call.1} parent=39 // pred_check_branch
          %247 = sbr.rel (%p245) target = $region44
        $region43: #{tpu_custom_call.1} parent=39 // pred_region
          %248 = dma.done %s241, 8192
        $region44: #{tpu_custom_call.1} parent=39 // pred_fallthru
          _
        // Predicated region
        $region45: #{tpu_custom_call.1} parent=39 // pred_check
          %p249 = pneg %p79
        $region46: #{tpu_custom_call.1} parent=39 // pred_check_branch
          %251 = sbr.rel (%p249) target = $region48
        $region47: #{tpu_custom_call.1} parent=39 // pred_region
          %252 = dma.done [#allocation6], 16384
        $region48: #{tpu_custom_call.1} parent=39 // pred_fallthru
          _
        %s253 = sand.u32 %s45, 1
        %s254 = scalar_lea.sflag [#allocation3], %s253
        %s255 = sand.u32 %s45, 1
        %s256 = smul.addr %s255, 512
        %s257 = scalar_lea.vmem [#allocation2], %s256
        %p258 = pneg %p58
        %p259 = pneg %p55
        %p260 = pneg %p79
        %p261 = pneg %p76
        %p262 = pneg %p100
        %p263 = pneg %p97
        %p264 = pneg %p121
        %p265 = pneg %p118
        %p266 = pneg %p142
        %p267 = pneg %p139
        %p268 = pneg %p170
        %p269 = pneg %p167
        %s270 = sand.u32 %s157, 1
        %s271 = scalar_lea.sflag [#allocation4], %s270
        %s272 = sand.u32 %s157, 1
        %s273 = smul.addr %s272, 128
        %s274 = scalar_lea.vmem [#allocation7], %s273
        %v276 = vld [vmem:[%s244] sm:$0xff]
        %v277 = vld [vmem:[%s244 + $0x8] sm:$0xff]
        %v278 = vld [vmem:[%s244 + $0x10] sm:$0xff]
        %v279 = vld [vmem:[%s244 + $0x18] sm:$0xff]
        %v280 = vld [vmem:[%s244 + $0x20] sm:$0xff]
        %v281 = vld [vmem:[%s244 + $0x28] sm:$0xff]
        %v282 = vld [vmem:[%s244 + $0x30] sm:$0xff]
        %v283 = vld [vmem:[%s244 + $0x38] sm:$0xff]
        %v284 = vld [vmem:[%s244 + $0x40] sm:$0xff]
        %v285 = vld [vmem:[%s244 + $0x48] sm:$0xff]
        %v286 = vld [vmem:[%s244 + $0x50] sm:$0xff]
        %v287 = vld [vmem:[%s244 + $0x58] sm:$0xff]
        %v288 = vld [vmem:[%s244 + $0x60] sm:$0xff]
        %v289 = vld [vmem:[%s244 + $0x68] sm:$0xff]
        %v290 = vld [vmem:[%s244 + $0x70] sm:$0xff]
        %v291 = vld [vmem:[%s244 + $0x78] sm:$0xff]
        %v292 = vld [vmem:[%s244 + $0x80] sm:$0xff]
        %v293 = vld [vmem:[%s244 + $0x88] sm:$0xff]
        %v294 = vld [vmem:[%s244 + $0x90] sm:$0xff]
        %v295 = vld [vmem:[%s244 + $0x98] sm:$0xff]
        %v296 = vld [vmem:[%s244 + $0xa0] sm:$0xff]
        %v297 = vld [vmem:[%s244 + $0xa8] sm:$0xff]
        %v298 = vld [vmem:[%s244 + $0xb0] sm:$0xff]
        %v299 = vld [vmem:[%s244 + $0xb8] sm:$0xff]
        %v300 = vld [vmem:[%s244 + $0xc0] sm:$0xff]
        %v301 = vld [vmem:[%s244 + $0xc8] sm:$0xff]
        %v302 = vld [vmem:[%s244 + $0xd0] sm:$0xff]
        %v303 = vld [vmem:[%s244 + $0xd8] sm:$0xff]
        %v304 = vld [vmem:[%s244 + $0xe0] sm:$0xff]
        %v305 = vld [vmem:[%s244 + $0xe8] sm:$0xff]
        %v306 = vld [vmem:[%s244 + $0xf0] sm:$0xff]
        %v307 = vld [vmem:[%s244 + $0xf8] sm:$0xff]
        %v308 = vld [vmem:[%s244 + $0x100] sm:$0xff]
        %v309 = vld [vmem:[%s244 + $0x108] sm:$0xff]
        %v310 = vld [vmem:[%s244 + $0x110] sm:$0xff]
        %v311 = vld [vmem:[%s244 + $0x118] sm:$0xff]
        %v312 = vld [vmem:[%s244 + $0x120] sm:$0xff]
        %v313 = vld [vmem:[%s244 + $0x128] sm:$0xff]
        %v314 = vld [vmem:[%s244 + $0x130] sm:$0xff]
        %v315 = vld [vmem:[%s244 + $0x138] sm:$0xff]
        %v316 = vld [vmem:[%s244 + $0x140] sm:$0xff]
        %v317 = vld [vmem:[%s244 + $0x148] sm:$0xff]
        %v318 = vld [vmem:[%s244 + $0x150] sm:$0xff]
        %v319 = vld [vmem:[%s244 + $0x158] sm:$0xff]
        %v320 = vld [vmem:[%s244 + $0x160] sm:$0xff]
        %v321 = vld [vmem:[%s244 + $0x168] sm:$0xff]
        %v322 = vld [vmem:[%s244 + $0x170] sm:$0xff]
        %v323 = vld [vmem:[%s244 + $0x178] sm:$0xff]
        %v324 = vld [vmem:[%s244 + $0x180] sm:$0xff]
        %v325 = vld [vmem:[%s244 + $0x188] sm:$0xff]
        %v326 = vld [vmem:[%s244 + $0x190] sm:$0xff]
        %v327 = vld [vmem:[%s244 + $0x198] sm:$0xff]
        %v328 = vld [vmem:[%s244 + $0x1a0] sm:$0xff]
        %v329 = vld [vmem:[%s244 + $0x1a8] sm:$0xff]
        %v330 = vld [vmem:[%s244 + $0x1b0] sm:$0xff]
        %v331 = vld [vmem:[%s244 + $0x1b8] sm:$0xff]
        %v332 = vld [vmem:[%s244 + $0x1c0] sm:$0xff]
        %v333 = vld [vmem:[%s244 + $0x1c8] sm:$0xff]
        %v334 = vld [vmem:[%s244 + $0x1d0] sm:$0xff]
        %v335 = vld [vmem:[%s244 + $0x1d8] sm:$0xff]
        %v336 = vld [vmem:[%s244 + $0x1e0] sm:$0xff]
        %v337 = vld [vmem:[%s244 + $0x1e8] sm:$0xff]
        %v338 = vld [vmem:[%s244 + $0x1f0] sm:$0xff]
        %v339 = vld [vmem:[%s244 + $0x1f8] sm:$0xff]
        %v340 = vpack.c.bf16 %v277, %v276
        %v341 = vpack.c.bf16 %v279, %v278
        %v342 = vpack.c.bf16 %v281, %v280
        %v343 = vpack.c.bf16 %v283, %v282
        %v344 = vpack.c.bf16 %v285, %v284
        %v345 = vpack.c.bf16 %v287, %v286
        %v346 = vpack.c.bf16 %v289, %v288
        %v347 = vpack.c.bf16 %v291, %v290
        %v348 = vpack.c.bf16 %v293, %v292
        %v349 = vpack.c.bf16 %v295, %v294
        %v350 = vpack.c.bf16 %v297, %v296
        %v351 = vpack.c.bf16 %v299, %v298
        %v352 = vpack.c.bf16 %v301, %v300
        %v353 = vpack.c.bf16 %v303, %v302
        %v354 = vpack.c.bf16 %v305, %v304
        %v355 = vpack.c.bf16 %v307, %v306
        %v356 = vpack.c.bf16 %v309, %v308
        %v357 = vpack.c.bf16 %v311, %v310
        %v358 = vpack.c.bf16 %v313, %v312
        %v359 = vpack.c.bf16 %v315, %v314
        %v360 = vpack.c.bf16 %v317, %v316
        %v361 = vpack.c.bf16 %v319, %v318
        %v362 = vpack.c.bf16 %v321, %v320
        %v363 = vpack.c.bf16 %v323, %v322
        %v364 = vpack.c.bf16 %v325, %v324
        %v365 = vpack.c.bf16 %v327, %v326
        %v366 = vpack.c.bf16 %v329, %v328
        %v367 = vpack.c.bf16 %v331, %v330
        %v368 = vpack.c.bf16 %v333, %v332
        %v369 = vpack.c.bf16 %v335, %v334
        %v370 = vpack.c.bf16 %v337, %v336
        %v371 = vpack.c.bf16 %v339, %v338
        %v372 = vld [vmem:[#allocation5] sm:$0xff]
        %v373 = vld [vmem:[#allocation5 + $0x8] sm:$0xff]
        %v374 = vld [vmem:[#allocation5 + $0x10] sm:$0xff]
        %v375 = vld [vmem:[#allocation5 + $0x18] sm:$0xff]
        %v376 = vld [vmem:[#allocation5 + $0x20] sm:$0xff]
        %v377 = vld [vmem:[#allocation5 + $0x28] sm:$0xff]
        %v378 = vld [vmem:[#allocation5 + $0x30] sm:$0xff]
        %v379 = vld [vmem:[#allocation5 + $0x38] sm:$0xff]
        %v380 = vld [vmem:[#allocation5 + $0x40] sm:$0xff]
        %v381 = vld [vmem:[#allocation5 + $0x48] sm:$0xff]
        %v382 = vld [vmem:[#allocation5 + $0x50] sm:$0xff]
        %v383 = vld [vmem:[#allocation5 + $0x58] sm:$0xff]
        %v384 = vld [vmem:[#allocation5 + $0x60] sm:$0xff]
        %v385 = vld [vmem:[#allocation5 + $0x68] sm:$0xff]
        %v386 = vld [vmem:[#allocation5 + $0x70] sm:$0xff]
        %v387 = vld [vmem:[#allocation5 + $0x78] sm:$0xff]
        %v388 = vld [vmem:[#allocation5 + $0x80] sm:$0xff]
        %v389 = vld [vmem:[#allocation5 + $0x88] sm:$0xff]
        %v390 = vld [vmem:[#allocation5 + $0x90] sm:$0xff]
        %v391 = vld [vmem:[#allocation5 + $0x98] sm:$0xff]
        %v392 = vld [vmem:[#allocation5 + $0xa0] sm:$0xff]
        %v393 = vld [vmem:[#allocation5 + $0xa8] sm:$0xff]
        %v394 = vld [vmem:[#allocation5 + $0xb0] sm:$0xff]
        %v395 = vld [vmem:[#allocation5 + $0xb8] sm:$0xff]
        %v396 = vld [vmem:[#allocation5 + $0xc0] sm:$0xff]
        %v397 = vld [vmem:[#allocation5 + $0xc8] sm:$0xff]
        %v398 = vld [vmem:[#allocation5 + $0xd0] sm:$0xff]
        %v399 = vld [vmem:[#allocation5 + $0xd8] sm:$0xff]
        %v400 = vld [vmem:[#allocation5 + $0xe0] sm:$0xff]
        %v401 = vld [vmem:[#allocation5 + $0xe8] sm:$0xff]
        %v402 = vld [vmem:[#allocation5 + $0xf0] sm:$0xff]
        %v403 = vld [vmem:[#allocation5 + $0xf8] sm:$0xff]
        %v404 = vld [vmem:[#allocation5 + $0x100] sm:$0xff]
        %v405 = vld [vmem:[#allocation5 + $0x108] sm:$0xff]
        %v406 = vld [vmem:[#allocation5 + $0x110] sm:$0xff]
        %v407 = vld [vmem:[#allocation5 + $0x118] sm:$0xff]
        %v408 = vld [vmem:[#allocation5 + $0x120] sm:$0xff]
        %v409 = vld [vmem:[#allocation5 + $0x128] sm:$0xff]
        %v410 = vld [vmem:[#allocation5 + $0x130] sm:$0xff]
        %v411 = vld [vmem:[#allocation5 + $0x138] sm:$0xff]
        %v412 = vld [vmem:[#allocation5 + $0x140] sm:$0xff]
        %v413 = vld [vmem:[#allocation5 + $0x148] sm:$0xff]
        %v414 = vld [vmem:[#allocation5 + $0x150] sm:$0xff]
        %v415 = vld [vmem:[#allocation5 + $0x158] sm:$0xff]
        %v416 = vld [vmem:[#allocation5 + $0x160] sm:$0xff]
        %v417 = vld [vmem:[#allocation5 + $0x168] sm:$0xff]
        %v418 = vld [vmem:[#allocation5 + $0x170] sm:$0xff]
        %v419 = vld [vmem:[#allocation5 + $0x178] sm:$0xff]
        %v420 = vld [vmem:[#allocation5 + $0x180] sm:$0xff]
        %v421 = vld [vmem:[#allocation5 + $0x188] sm:$0xff]
        %v422 = vld [vmem:[#allocation5 + $0x190] sm:$0xff]
        %v423 = vld [vmem:[#allocation5 + $0x198] sm:$0xff]
        %v424 = vld [vmem:[#allocation5 + $0x1a0] sm:$0xff]
        %v425 = vld [vmem:[#allocation5 + $0x1a8] sm:$0xff]
        %v426 = vld [vmem:[#allocation5 + $0x1b0] sm:$0xff]
        %v427 = vld [vmem:[#allocation5 + $0x1b8] sm:$0xff]
        %v428 = vld [vmem:[#allocation5 + $0x1c0] sm:$0xff]
        %v429 = vld [vmem:[#allocation5 + $0x1c8] sm:$0xff]
        %v430 = vld [vmem:[#allocation5 + $0x1d0] sm:$0xff]
        %v431 = vld [vmem:[#allocation5 + $0x1d8] sm:$0xff]
        %v432 = vld [vmem:[#allocation5 + $0x1e0] sm:$0xff]
        %v433 = vld [vmem:[#allocation5 + $0x1e8] sm:$0xff]
        %v434 = vld [vmem:[#allocation5 + $0x1f0] sm:$0xff]
        %v435 = vld [vmem:[#allocation5 + $0x1f8] sm:$0xff]
        %v436 = vld [vmem:[#allocation5 + $0x200] sm:$0xff]
        %v437 = vld [vmem:[#allocation5 + $0x208] sm:$0xff]
        %v438 = vld [vmem:[#allocation5 + $0x210] sm:$0xff]
        %v439 = vld [vmem:[#allocation5 + $0x218] sm:$0xff]
        %v440 = vld [vmem:[#allocation5 + $0x220] sm:$0xff]
        %v441 = vld [vmem:[#allocation5 + $0x228] sm:$0xff]
        %v442 = vld [vmem:[#allocation5 + $0x230] sm:$0xff]
        %v443 = vld [vmem:[#allocation5 + $0x238] sm:$0xff]
        %v444 = vld [vmem:[#allocation5 + $0x240] sm:$0xff]
        %v445 = vld [vmem:[#allocation5 + $0x248] sm:$0xff]
        %v446 = vld [vmem:[#allocation5 + $0x250] sm:$0xff]
        %v447 = vld [vmem:[#allocation5 + $0x258] sm:$0xff]
        %v448 = vld [vmem:[#allocation5 + $0x260] sm:$0xff]
        %v449 = vld [vmem:[#allocation5 + $0x268] sm:$0xff]
        %v450 = vld [vmem:[#allocation5 + $0x270] sm:$0xff]
        %v451 = vld [vmem:[#allocation5 + $0x278] sm:$0xff]
        %v452 = vld [vmem:[#allocation5 + $0x280] sm:$0xff]
        %v453 = vld [vmem:[#allocation5 + $0x288] sm:$0xff]
        %v454 = vld [vmem:[#allocation5 + $0x290] sm:$0xff]
        %v455 = vld [vmem:[#allocation5 + $0x298] sm:$0xff]
        %v456 = vld [vmem:[#allocation5 + $0x2a0] sm:$0xff]
        %v457 = vld [vmem:[#allocation5 + $0x2a8] sm:$0xff]
        %v458 = vld [vmem:[#allocation5 + $0x2b0] sm:$0xff]
        %v459 = vld [vmem:[#allocation5 + $0x2b8] sm:$0xff]
        %v460 = vld [vmem:[#allocation5 + $0x2c0] sm:$0xff]
        %v461 = vld [vmem:[#allocation5 + $0x2c8] sm:$0xff]
        %v462 = vld [vmem:[#allocation5 + $0x2d0] sm:$0xff]
        %v463 = vld [vmem:[#allocation5 + $0x2d8] sm:$0xff]
        %v464 = vld [vmem:[#allocation5 + $0x2e0] sm:$0xff]
        %v465 = vld [vmem:[#allocation5 + $0x2e8] sm:$0xff]
        %v466 = vld [vmem:[#allocation5 + $0x2f0] sm:$0xff]
        %v467 = vld [vmem:[#allocation5 + $0x2f8] sm:$0xff]
        %v468 = vld [vmem:[#allocation5 + $0x300] sm:$0xff]
        %v469 = vld [vmem:[#allocation5 + $0x308] sm:$0xff]
        %v470 = vld [vmem:[#allocation5 + $0x310] sm:$0xff]
        %v471 = vld [vmem:[#allocation5 + $0x318] sm:$0xff]
        %v472 = vld [vmem:[#allocation5 + $0x320] sm:$0xff]
        %v473 = vld [vmem:[#allocation5 + $0x328] sm:$0xff]
        %v474 = vld [vmem:[#allocation5 + $0x330] sm:$0xff]
        %v475 = vld [vmem:[#allocation5 + $0x338] sm:$0xff]
        %v476 = vld [vmem:[#allocation5 + $0x340] sm:$0xff]
        %v477 = vld [vmem:[#allocation5 + $0x348] sm:$0xff]
        %v478 = vld [vmem:[#allocation5 + $0x350] sm:$0xff]
        %v479 = vld [vmem:[#allocation5 + $0x358] sm:$0xff]
        %v480 = vld [vmem:[#allocation5 + $0x360] sm:$0xff]
        %v481 = vld [vmem:[#allocation5 + $0x368] sm:$0xff]
        %v482 = vld [vmem:[#allocation5 + $0x370] sm:$0xff]
        %v483 = vld [vmem:[#allocation5 + $0x378] sm:$0xff]
        %v484 = vld [vmem:[#allocation5 + $0x380] sm:$0xff]
        %v485 = vld [vmem:[#allocation5 + $0x388] sm:$0xff]
        %v486 = vld [vmem:[#allocation5 + $0x390] sm:$0xff]
        %v487 = vld [vmem:[#allocation5 + $0x398] sm:$0xff]
        %v488 = vld [vmem:[#allocation5 + $0x3a0] sm:$0xff]
        %v489 = vld [vmem:[#allocation5 + $0x3a8] sm:$0xff]
        %v490 = vld [vmem:[#allocation5 + $0x3b0] sm:$0xff]
        %v491 = vld [vmem:[#allocation5 + $0x3b8] sm:$0xff]
        %v492 = vld [vmem:[#allocation5 + $0x3c0] sm:$0xff]
        %v493 = vld [vmem:[#allocation5 + $0x3c8] sm:$0xff]
        %v494 = vld [vmem:[#allocation5 + $0x3d0] sm:$0xff]
        %v495 = vld [vmem:[#allocation5 + $0x3d8] sm:$0xff]
        %v496 = vld [vmem:[#allocation5 + $0x3e0] sm:$0xff]
        %v497 = vld [vmem:[#allocation5 + $0x3e8] sm:$0xff]
        %v498 = vld [vmem:[#allocation5 + $0x3f0] sm:$0xff]
        %v499 = vld [vmem:[#allocation5 + $0x3f8] sm:$0xff]
        %v500 = vld [vmem:[%s2] sm:$0xff]
        %v501 = vld [vmem:[%s2 + $0x8] sm:$0xff]
        %v502 = vld [vmem:[%s2 + $0x10] sm:$0xff]
        %v503 = vld [vmem:[%s2 + $0x18] sm:$0xff]
        %v504 = vld [vmem:[%s2 + $0x20] sm:$0xff]
        %v505 = vld [vmem:[%s2 + $0x28] sm:$0xff]
        %v506 = vld [vmem:[%s2 + $0x30] sm:$0xff]
        %v507 = vld [vmem:[%s2 + $0x38] sm:$0xff]
        %v508 = vld [vmem:[%s2 + $0x40] sm:$0xff]
        %v509 = vld [vmem:[%s2 + $0x48] sm:$0xff]
        %v510 = vld [vmem:[%s2 + $0x50] sm:$0xff]
        %v511 = vld [vmem:[%s2 + $0x58] sm:$0xff]
        %v512 = vld [vmem:[%s2 + $0x60] sm:$0xff]
        %v513 = vld [vmem:[%s2 + $0x68] sm:$0xff]
        %v514 = vld [vmem:[%s2 + $0x70] sm:$0xff]
        %v515 = vld [vmem:[%s2 + $0x78] sm:$0xff]
        %v516 = vld [vmem:[%s2 + $0x80] sm:$0xff]
        %v517 = vld [vmem:[%s2 + $0x88] sm:$0xff]
        %v518 = vld [vmem:[%s2 + $0x90] sm:$0xff]
        %v519 = vld [vmem:[%s2 + $0x98] sm:$0xff]
        %v520 = vld [vmem:[%s2 + $0xa0] sm:$0xff]
        %v521 = vld [vmem:[%s2 + $0xa8] sm:$0xff]
        %v522 = vld [vmem:[%s2 + $0xb0] sm:$0xff]
        %v523 = vld [vmem:[%s2 + $0xb8] sm:$0xff]
        %v524 = vld [vmem:[%s2 + $0xc0] sm:$0xff]
        %v525 = vld [vmem:[%s2 + $0xc8] sm:$0xff]
        %v526 = vld [vmem:[%s2 + $0xd0] sm:$0xff]
        %v527 = vld [vmem:[%s2 + $0xd8] sm:$0xff]
        %v528 = vld [vmem:[%s2 + $0xe0] sm:$0xff]
        %v529 = vld [vmem:[%s2 + $0xe8] sm:$0xff]
        %v530 = vld [vmem:[%s2 + $0xf0] sm:$0xff]
        %v531 = vld [vmem:[%s2 + $0xf8] sm:$0xff]
        %v532 = vld [vmem:[%s2 + $0x100] sm:$0xff]
        %v533 = vld [vmem:[%s2 + $0x108] sm:$0xff]
        %v534 = vld [vmem:[%s2 + $0x110] sm:$0xff]
        %v535 = vld [vmem:[%s2 + $0x118] sm:$0xff]
        %v536 = vld [vmem:[%s2 + $0x120] sm:$0xff]
        %v537 = vld [vmem:[%s2 + $0x128] sm:$0xff]
        %v538 = vld [vmem:[%s2 + $0x130] sm:$0xff]
        %v539 = vld [vmem:[%s2 + $0x138] sm:$0xff]
        %v540 = vld [vmem:[%s2 + $0x140] sm:$0xff]
        %v541 = vld [vmem:[%s2 + $0x148] sm:$0xff]
        %v542 = vld [vmem:[%s2 + $0x150] sm:$0xff]
        %v543 = vld [vmem:[%s2 + $0x158] sm:$0xff]
        %v544 = vld [vmem:[%s2 + $0x160] sm:$0xff]
        %v545 = vld [vmem:[%s2 + $0x168] sm:$0xff]
        %v546 = vld [vmem:[%s2 + $0x170] sm:$0xff]
        %v547 = vld [vmem:[%s2 + $0x178] sm:$0xff]
        %v548 = vld [vmem:[%s2 + $0x180] sm:$0xff]
        %v549 = vld [vmem:[%s2 + $0x188] sm:$0xff]
        %v550 = vld [vmem:[%s2 + $0x190] sm:$0xff]
        %v551 = vld [vmem:[%s2 + $0x198] sm:$0xff]
        %v552 = vld [vmem:[%s2 + $0x1a0] sm:$0xff]
        %v553 = vld [vmem:[%s2 + $0x1a8] sm:$0xff]
        %v554 = vld [vmem:[%s2 + $0x1b0] sm:$0xff]
        %v555 = vld [vmem:[%s2 + $0x1b8] sm:$0xff]
        %v556 = vld [vmem:[%s2 + $0x1c0] sm:$0xff]
        %v557 = vld [vmem:[%s2 + $0x1c8] sm:$0xff]
        %v558 = vld [vmem:[%s2 + $0x1d0] sm:$0xff]
        %v559 = vld [vmem:[%s2 + $0x1d8] sm:$0xff]
        %v560 = vld [vmem:[%s2 + $0x1e0] sm:$0xff]
        %v561 = vld [vmem:[%s2 + $0x1e8] sm:$0xff]
        %v562 = vld [vmem:[%s2 + $0x1f0] sm:$0xff]
        %v563 = vld [vmem:[%s2 + $0x1f8] sm:$0xff]
        %565 = vset.pattern.permute.xlu0 0
        %566 = vperm.xlu0 %565, %v500
        %v567 = vpop.permute.xlu0 %566
        %570 = vset.pattern.permute.xlu0 0
        %571 = vperm.xlu0 %570, %v501
        %v572 = vpop.permute.xlu0 %571
        %575 = vset.pattern.permute.xlu0 0
        %576 = vperm.xlu0 %575, %v502
        %v577 = vpop.permute.xlu0 %576
        %580 = vset.pattern.permute.xlu0 0
        %581 = vperm.xlu0 %580, %v503
        %v582 = vpop.permute.xlu0 %581
        %585 = vset.pattern.permute.xlu0 0
        %586 = vperm.xlu0 %585, %v504
        %v587 = vpop.permute.xlu0 %586
        %590 = vset.pattern.permute.xlu0 0
        %591 = vperm.xlu0 %590, %v505
        %v592 = vpop.permute.xlu0 %591
        %595 = vset.pattern.permute.xlu0 0
        %596 = vperm.xlu0 %595, %v506
        %v597 = vpop.permute.xlu0 %596
        %600 = vset.pattern.permute.xlu0 0
        %601 = vperm.xlu0 %600, %v507
        %v602 = vpop.permute.xlu0 %601
        %605 = vset.pattern.permute.xlu0 0
        %606 = vperm.xlu0 %605, %v508
        %v607 = vpop.permute.xlu0 %606
        %610 = vset.pattern.permute.xlu0 0
        %611 = vperm.xlu0 %610, %v509
        %v612 = vpop.permute.xlu0 %611
        %615 = vset.pattern.permute.xlu0 0
        %616 = vperm.xlu0 %615, %v510
        %v617 = vpop.permute.xlu0 %616
        %620 = vset.pattern.permute.xlu0 0
        %621 = vperm.xlu0 %620, %v511
        %v622 = vpop.permute.xlu0 %621
        %625 = vset.pattern.permute.xlu0 0
        %626 = vperm.xlu0 %625, %v512
        %v627 = vpop.permute.xlu0 %626
        %630 = vset.pattern.permute.xlu0 0
        %631 = vperm.xlu0 %630, %v513
        %v632 = vpop.permute.xlu0 %631
        %635 = vset.pattern.permute.xlu0 0
        %636 = vperm.xlu0 %635, %v514
        %v637 = vpop.permute.xlu0 %636
        %640 = vset.pattern.permute.xlu0 0
        %641 = vperm.xlu0 %640, %v515
        %v642 = vpop.permute.xlu0 %641
        %645 = vset.pattern.permute.xlu0 0
        %646 = vperm.xlu0 %645, %v516
        %v647 = vpop.permute.xlu0 %646
        %650 = vset.pattern.permute.xlu0 0
        %651 = vperm.xlu0 %650, %v517
        %v652 = vpop.permute.xlu0 %651
        %655 = vset.pattern.permute.xlu0 0
        %656 = vperm.xlu0 %655, %v518
        %v657 = vpop.permute.xlu0 %656
        %660 = vset.pattern.permute.xlu0 0
        %661 = vperm.xlu0 %660, %v519
        %v662 = vpop.permute.xlu0 %661
        %665 = vset.pattern.permute.xlu0 0
        %666 = vperm.xlu0 %665, %v520
        %v667 = vpop.permute.xlu0 %666
        %670 = vset.pattern.permute.xlu0 0
        %671 = vperm.xlu0 %670, %v521
        %v672 = vpop.permute.xlu0 %671
        %675 = vset.pattern.permute.xlu0 0
        %676 = vperm.xlu0 %675, %v522
        %v677 = vpop.permute.xlu0 %676
        %680 = vset.pattern.permute.xlu0 0
        %681 = vperm.xlu0 %680, %v523
        %v682 = vpop.permute.xlu0 %681
        %685 = vset.pattern.permute.xlu0 0
        %686 = vperm.xlu0 %685, %v524
        %v687 = vpop.permute.xlu0 %686
        %690 = vset.pattern.permute.xlu0 0
        %691 = vperm.xlu0 %690, %v525
        %v692 = vpop.permute.xlu0 %691
        %695 = vset.pattern.permute.xlu0 0
        %696 = vperm.xlu0 %695, %v526
        %v697 = vpop.permute.xlu0 %696
        %700 = vset.pattern.permute.xlu0 0
        %701 = vperm.xlu0 %700, %v527
        %v702 = vpop.permute.xlu0 %701
        %705 = vset.pattern.permute.xlu0 0
        %706 = vperm.xlu0 %705, %v528
        %v707 = vpop.permute.xlu0 %706
        %710 = vset.pattern.permute.xlu0 0
        %711 = vperm.xlu0 %710, %v529
        %v712 = vpop.permute.xlu0 %711
        %715 = vset.pattern.permute.xlu0 0
        %716 = vperm.xlu0 %715, %v530
        %v717 = vpop.permute.xlu0 %716
        %720 = vset.pattern.permute.xlu0 0
        %721 = vperm.xlu0 %720, %v531
        %v722 = vpop.permute.xlu0 %721
        %725 = vset.pattern.permute.xlu0 0
        %726 = vperm.xlu0 %725, %v532
        %v727 = vpop.permute.xlu0 %726
        %730 = vset.pattern.permute.xlu0 0
        %731 = vperm.xlu0 %730, %v533
        %v732 = vpop.permute.xlu0 %731
        %735 = vset.pattern.permute.xlu0 0
        %736 = vperm.xlu0 %735, %v534
        %v737 = vpop.permute.xlu0 %736
        %740 = vset.pattern.permute.xlu0 0
        %741 = vperm.xlu0 %740, %v535
        %v742 = vpop.permute.xlu0 %741
        %745 = vset.pattern.permute.xlu0 0
        %746 = vperm.xlu0 %745, %v536
        %v747 = vpop.permute.xlu0 %746
        %750 = vset.pattern.permute.xlu0 0
        %751 = vperm.xlu0 %750, %v537
        %v752 = vpop.permute.xlu0 %751
        %755 = vset.pattern.permute.xlu0 0
        %756 = vperm.xlu0 %755, %v538
        %v757 = vpop.permute.xlu0 %756
        %760 = vset.pattern.permute.xlu0 0
        %761 = vperm.xlu0 %760, %v539
        %v762 = vpop.permute.xlu0 %761
        %765 = vset.pattern.permute.xlu0 0
        %766 = vperm.xlu0 %765, %v540
        %v767 = vpop.permute.xlu0 %766
        %770 = vset.pattern.permute.xlu0 0
        %771 = vperm.xlu0 %770, %v541
        %v772 = vpop.permute.xlu0 %771
        %775 = vset.pattern.permute.xlu0 0
        %776 = vperm.xlu0 %775, %v542
        %v777 = vpop.permute.xlu0 %776
        %780 = vset.pattern.permute.xlu0 0
        %781 = vperm.xlu0 %780, %v543
        %v782 = vpop.permute.xlu0 %781
        %785 = vset.pattern.permute.xlu0 0
        %786 = vperm.xlu0 %785, %v544
        %v787 = vpop.permute.xlu0 %786
        %790 = vset.pattern.permute.xlu0 0
        %791 = vperm.xlu0 %790, %v545
        %v792 = vpop.permute.xlu0 %791
        %795 = vset.pattern.permute.xlu0 0
        %796 = vperm.xlu0 %795, %v546
        %v797 = vpop.permute.xlu0 %796
        %800 = vset.pattern.permute.xlu0 0
        %801 = vperm.xlu0 %800, %v547
        %v802 = vpop.permute.xlu0 %801
        %805 = vset.pattern.permute.xlu0 0
        %806 = vperm.xlu0 %805, %v548
        %v807 = vpop.permute.xlu0 %806
        %810 = vset.pattern.permute.xlu0 0
        %811 = vperm.xlu0 %810, %v549
        %v812 = vpop.permute.xlu0 %811
        %815 = vset.pattern.permute.xlu0 0
        %816 = vperm.xlu0 %815, %v550
        %v817 = vpop.permute.xlu0 %816
        %820 = vset.pattern.permute.xlu0 0
        %821 = vperm.xlu0 %820, %v551
        %v822 = vpop.permute.xlu0 %821
        %825 = vset.pattern.permute.xlu0 0
        %826 = vperm.xlu0 %825, %v552
        %v827 = vpop.permute.xlu0 %826
        %830 = vset.pattern.permute.xlu0 0
        %831 = vperm.xlu0 %830, %v553
        %v832 = vpop.permute.xlu0 %831
        %835 = vset.pattern.permute.xlu0 0
        %836 = vperm.xlu0 %835, %v554
        %v837 = vpop.permute.xlu0 %836
        %840 = vset.pattern.permute.xlu0 0
        %841 = vperm.xlu0 %840, %v555
        %v842 = vpop.permute.xlu0 %841
        %845 = vset.pattern.permute.xlu0 0
        %846 = vperm.xlu0 %845, %v556
        %v847 = vpop.permute.xlu0 %846
        %850 = vset.pattern.permute.xlu0 0
        %851 = vperm.xlu0 %850, %v557
        %v852 = vpop.permute.xlu0 %851
        %855 = vset.pattern.permute.xlu0 0
        %856 = vperm.xlu0 %855, %v558
        %v857 = vpop.permute.xlu0 %856
        %860 = vset.pattern.permute.xlu0 0
        %861 = vperm.xlu0 %860, %v559
        %v862 = vpop.permute.xlu0 %861
        %865 = vset.pattern.permute.xlu0 0
        %866 = vperm.xlu0 %865, %v560
        %v867 = vpop.permute.xlu0 %866
        %870 = vset.pattern.permute.xlu0 0
        %871 = vperm.xlu0 %870, %v561
        %v872 = vpop.permute.xlu0 %871
        %875 = vset.pattern.permute.xlu0 0
        %876 = vperm.xlu0 %875, %v562
        %v877 = vpop.permute.xlu0 %876
        %880 = vset.pattern.permute.xlu0 0
        %881 = vperm.xlu0 %880, %v563
        %v882 = vpop.permute.xlu0 %881
        %v1012 = vunpack.c.l.b16 %v372
        %v1013 = vunpack.c.h.b16 %v372
        %v1014 = vunpack.c.l.b16 %v373
        %v1015 = vunpack.c.h.b16 %v373
        %v1016 = vunpack.c.l.b16 %v374
        %v1017 = vunpack.c.h.b16 %v374
        %v1018 = vunpack.c.l.b16 %v375
        %v1019 = vunpack.c.h.b16 %v375
        %v1020 = vunpack.c.l.b16 %v376
        %v1021 = vunpack.c.h.b16 %v376
        %v1022 = vunpack.c.l.b16 %v377
        %v1023 = vunpack.c.h.b16 %v377
        %v1024 = vunpack.c.l.b16 %v378
        %v1025 = vunpack.c.h.b16 %v378
        %v1026 = vunpack.c.l.b16 %v379
        %v1027 = vunpack.c.h.b16 %v379
        %v1028 = vunpack.c.l.b16 %v380
        %v1029 = vunpack.c.h.b16 %v380
        %v1030 = vunpack.c.l.b16 %v381
        %v1031 = vunpack.c.h.b16 %v381
        %v1032 = vunpack.c.l.b16 %v382
        %v1033 = vunpack.c.h.b16 %v382
        %v1034 = vunpack.c.l.b16 %v383
        %v1035 = vunpack.c.h.b16 %v383
        %v1036 = vunpack.c.l.b16 %v384
        %v1037 = vunpack.c.h.b16 %v384
        %v1038 = vunpack.c.l.b16 %v385
        %v1039 = vunpack.c.h.b16 %v385
        %v1040 = vunpack.c.l.b16 %v386
        %v1041 = vunpack.c.h.b16 %v386
        %v1042 = vunpack.c.l.b16 %v387
        %v1043 = vunpack.c.h.b16 %v387
        %v1044 = vunpack.c.l.b16 %v388
        %v1045 = vunpack.c.h.b16 %v388
        %v1046 = vunpack.c.l.b16 %v389
        %v1047 = vunpack.c.h.b16 %v389
        %v1048 = vunpack.c.l.b16 %v390
        %v1049 = vunpack.c.h.b16 %v390
        %v1050 = vunpack.c.l.b16 %v391
        %v1051 = vunpack.c.h.b16 %v391
        %v1052 = vunpack.c.l.b16 %v392
        %v1053 = vunpack.c.h.b16 %v392
        %v1054 = vunpack.c.l.b16 %v393
        %v1055 = vunpack.c.h.b16 %v393
        %v1056 = vunpack.c.l.b16 %v394
        %v1057 = vunpack.c.h.b16 %v394
        %v1058 = vunpack.c.l.b16 %v395
        %v1059 = vunpack.c.h.b16 %v395
        %v1060 = vunpack.c.l.b16 %v396
        %v1061 = vunpack.c.h.b16 %v396
        %v1062 = vunpack.c.l.b16 %v397
        %v1063 = vunpack.c.h.b16 %v397
        %v1064 = vunpack.c.l.b16 %v398
        %v1065 = vunpack.c.h.b16 %v398
        %v1066 = vunpack.c.l.b16 %v399
        %v1067 = vunpack.c.h.b16 %v399
        %v1068 = vunpack.c.l.b16 %v400
        %v1069 = vunpack.c.h.b16 %v400
        %v1070 = vunpack.c.l.b16 %v401
        %v1071 = vunpack.c.h.b16 %v401
        %v1072 = vunpack.c.l.b16 %v402
        %v1073 = vunpack.c.h.b16 %v402
        %v1074 = vunpack.c.l.b16 %v403
        %v1075 = vunpack.c.h.b16 %v403
        %v1076 = vunpack.c.l.b16 %v404
        %v1077 = vunpack.c.h.b16 %v404
        %v1078 = vunpack.c.l.b16 %v405
        %v1079 = vunpack.c.h.b16 %v405
        %v1080 = vunpack.c.l.b16 %v406
        %v1081 = vunpack.c.h.b16 %v406
        %v1082 = vunpack.c.l.b16 %v407
        %v1083 = vunpack.c.h.b16 %v407
        %v1084 = vunpack.c.l.b16 %v408
        %v1085 = vunpack.c.h.b16 %v408
        %v1086 = vunpack.c.l.b16 %v409
        %v1087 = vunpack.c.h.b16 %v409
        %v1088 = vunpack.c.l.b16 %v410
        %v1089 = vunpack.c.h.b16 %v410
        %v1090 = vunpack.c.l.b16 %v411
        %v1091 = vunpack.c.h.b16 %v411
        %v1092 = vunpack.c.l.b16 %v412
        %v1093 = vunpack.c.h.b16 %v412
        %v1094 = vunpack.c.l.b16 %v413
        %v1095 = vunpack.c.h.b16 %v413
        %v1096 = vunpack.c.l.b16 %v414
        %v1097 = vunpack.c.h.b16 %v414
        %v1098 = vunpack.c.l.b16 %v415
        %v1099 = vunpack.c.h.b16 %v415
        %v1100 = vunpack.c.l.b16 %v416
        %v1101 = vunpack.c.h.b16 %v416
        %v1102 = vunpack.c.l.b16 %v417
        %v1103 = vunpack.c.h.b16 %v417
        %v1104 = vunpack.c.l.b16 %v418
        %v1105 = vunpack.c.h.b16 %v418
        %v1106 = vunpack.c.l.b16 %v419
        %v1107 = vunpack.c.h.b16 %v419
        %v1108 = vunpack.c.l.b16 %v420
        %v1109 = vunpack.c.h.b16 %v420
        %v1110 = vunpack.c.l.b16 %v421
        %v1111 = vunpack.c.h.b16 %v421
        %v1112 = vunpack.c.l.b16 %v422
        %v1113 = vunpack.c.h.b16 %v422
        %v1114 = vunpack.c.l.b16 %v423
        %v1115 = vunpack.c.h.b16 %v423
        %v1116 = vunpack.c.l.b16 %v424
        %v1117 = vunpack.c.h.b16 %v424
        %v1118 = vunpack.c.l.b16 %v425
        %v1119 = vunpack.c.h.b16 %v425
        %v1120 = vunpack.c.l.b16 %v426
        %v1121 = vunpack.c.h.b16 %v426
        %v1122 = vunpack.c.l.b16 %v427
        %v1123 = vunpack.c.h.b16 %v427
        %v1124 = vunpack.c.l.b16 %v428
        %v1125 = vunpack.c.h.b16 %v428
        %v1126 = vunpack.c.l.b16 %v429
        %v1127 = vunpack.c.h.b16 %v429
        %v1128 = vunpack.c.l.b16 %v430
        %v1129 = vunpack.c.h.b16 %v430
        %v1130 = vunpack.c.l.b16 %v431
        %v1131 = vunpack.c.h.b16 %v431
        %v1132 = vunpack.c.l.b16 %v432
        %v1133 = vunpack.c.h.b16 %v432
        %v1134 = vunpack.c.l.b16 %v433
        %v1135 = vunpack.c.h.b16 %v433
        %v1136 = vunpack.c.l.b16 %v434
        %v1137 = vunpack.c.h.b16 %v434
        %v1138 = vunpack.c.l.b16 %v435
        %v1139 = vunpack.c.h.b16 %v435
        %v1140 = vunpack.c.l.b16 %v436
        %v1141 = vunpack.c.h.b16 %v436
        %v1142 = vunpack.c.l.b16 %v437
        %v1143 = vunpack.c.h.b16 %v437
        %v1144 = vunpack.c.l.b16 %v438
        %v1145 = vunpack.c.h.b16 %v438
        %v1146 = vunpack.c.l.b16 %v439
        %v1147 = vunpack.c.h.b16 %v439
        %v1148 = vunpack.c.l.b16 %v440
        %v1149 = vunpack.c.h.b16 %v440
        %v1150 = vunpack.c.l.b16 %v441
        %v1151 = vunpack.c.h.b16 %v441
        %v1152 = vunpack.c.l.b16 %v442
        %v1153 = vunpack.c.h.b16 %v442
        %v1154 = vunpack.c.l.b16 %v443
        %v1155 = vunpack.c.h.b16 %v443
        %v1156 = vunpack.c.l.b16 %v444
        %v1157 = vunpack.c.h.b16 %v444
        %v1158 = vunpack.c.l.b16 %v445
        %v1159 = vunpack.c.h.b16 %v445
        %v1160 = vunpack.c.l.b16 %v446
        %v1161 = vunpack.c.h.b16 %v446
        %v1162 = vunpack.c.l.b16 %v447
        %v1163 = vunpack.c.h.b16 %v447
        %v1164 = vunpack.c.l.b16 %v448
        %v1165 = vunpack.c.h.b16 %v448
        %v1166 = vunpack.c.l.b16 %v449
        %v1167 = vunpack.c.h.b16 %v449
        %v1168 = vunpack.c.l.b16 %v450
        %v1169 = vunpack.c.h.b16 %v450
        %v1170 = vunpack.c.l.b16 %v451
        %v1171 = vunpack.c.h.b16 %v451
        %v1172 = vunpack.c.l.b16 %v452
        %v1173 = vunpack.c.h.b16 %v452
        %v1174 = vunpack.c.l.b16 %v453
        %v1175 = vunpack.c.h.b16 %v453
        %v1176 = vunpack.c.l.b16 %v454
        %v1177 = vunpack.c.h.b16 %v454
        %v1178 = vunpack.c.l.b16 %v455
        %v1179 = vunpack.c.h.b16 %v455
        %v1180 = vunpack.c.l.b16 %v456
        %v1181 = vunpack.c.h.b16 %v456
        %v1182 = vunpack.c.l.b16 %v457
        %v1183 = vunpack.c.h.b16 %v457
        %v1184 = vunpack.c.l.b16 %v458
        %v1185 = vunpack.c.h.b16 %v458
        %v1186 = vunpack.c.l.b16 %v459
        %v1187 = vunpack.c.h.b16 %v459
        %v1188 = vunpack.c.l.b16 %v460
        %v1189 = vunpack.c.h.b16 %v460
        %v1190 = vunpack.c.l.b16 %v461
        %v1191 = vunpack.c.h.b16 %v461
        %v1192 = vunpack.c.l.b16 %v462
        %v1193 = vunpack.c.h.b16 %v462
        %v1194 = vunpack.c.l.b16 %v463
        %v1195 = vunpack.c.h.b16 %v463
        %v1196 = vunpack.c.l.b16 %v464
        %v1197 = vunpack.c.h.b16 %v464
        %v1198 = vunpack.c.l.b16 %v465
        %v1199 = vunpack.c.h.b16 %v465
        %v1200 = vunpack.c.l.b16 %v466
        %v1201 = vunpack.c.h.b16 %v466
        %v1202 = vunpack.c.l.b16 %v467
        %v1203 = vunpack.c.h.b16 %v467
        %v1204 = vunpack.c.l.b16 %v468
        %v1205 = vunpack.c.h.b16 %v468
        %v1206 = vunpack.c.l.b16 %v469
        %v1207 = vunpack.c.h.b16 %v469
        %v1208 = vunpack.c.l.b16 %v470
        %v1209 = vunpack.c.h.b16 %v470
        %v1210 = vunpack.c.l.b16 %v471
        %v1211 = vunpack.c.h.b16 %v471
        %v1212 = vunpack.c.l.b16 %v472
        %v1213 = vunpack.c.h.b16 %v472
        %v1214 = vunpack.c.l.b16 %v473
        %v1215 = vunpack.c.h.b16 %v473
        %v1216 = vunpack.c.l.b16 %v474
        %v1217 = vunpack.c.h.b16 %v474
        %v1218 = vunpack.c.l.b16 %v475
        %v1219 = vunpack.c.h.b16 %v475
        %v1220 = vunpack.c.l.b16 %v476
        %v1221 = vunpack.c.h.b16 %v476
        %v1222 = vunpack.c.l.b16 %v477
        %v1223 = vunpack.c.h.b16 %v477
        %v1224 = vunpack.c.l.b16 %v478
        %v1225 = vunpack.c.h.b16 %v478
        %v1226 = vunpack.c.l.b16 %v479
        %v1227 = vunpack.c.h.b16 %v479
        %v1228 = vunpack.c.l.b16 %v480
        %v1229 = vunpack.c.h.b16 %v480
        %v1230 = vunpack.c.l.b16 %v481
        %v1231 = vunpack.c.h.b16 %v481
        %v1232 = vunpack.c.l.b16 %v482
        %v1233 = vunpack.c.h.b16 %v482
        %v1234 = vunpack.c.l.b16 %v483
        %v1235 = vunpack.c.h.b16 %v483
        %v1236 = vunpack.c.l.b16 %v484
        %v1237 = vunpack.c.h.b16 %v484
        %v1238 = vunpack.c.l.b16 %v485
        %v1239 = vunpack.c.h.b16 %v485
        %v1240 = vunpack.c.l.b16 %v486
        %v1241 = vunpack.c.h.b16 %v486
        %v1242 = vunpack.c.l.b16 %v487
        %v1243 = vunpack.c.h.b16 %v487
        %v1244 = vunpack.c.l.b16 %v488
        %v1245 = vunpack.c.h.b16 %v488
        %v1246 = vunpack.c.l.b16 %v489
        %v1247 = vunpack.c.h.b16 %v489
        %v1248 = vunpack.c.l.b16 %v490
        %v1249 = vunpack.c.h.b16 %v490
        %v1250 = vunpack.c.l.b16 %v491
        %v1251 = vunpack.c.h.b16 %v491
        %v1252 = vunpack.c.l.b16 %v492
        %v1253 = vunpack.c.h.b16 %v492
        %v1254 = vunpack.c.l.b16 %v493
        %v1255 = vunpack.c.h.b16 %v493
        %v1256 = vunpack.c.l.b16 %v494
        %v1257 = vunpack.c.h.b16 %v494
        %v1258 = vunpack.c.l.b16 %v495
        %v1259 = vunpack.c.h.b16 %v495
        %v1260 = vunpack.c.l.b16 %v496
        %v1261 = vunpack.c.h.b16 %v496
        %v1262 = vunpack.c.l.b16 %v497
        %v1263 = vunpack.c.h.b16 %v497
        %v1264 = vunpack.c.l.b16 %v498
        %v1265 = vunpack.c.h.b16 %v498
        %v1266 = vunpack.c.l.b16 %v499
        %v1267 = vunpack.c.h.b16 %v499
        %v1268 = vpack.c.b16 %v1016, %v1012
        %v1269 = vpack.c.b16 %v1017, %v1013
        %v1270 = vpack.c.b16 %v1018, %v1014
        %v1271 = vpack.c.b16 %v1019, %v1015
        %v1272 = vpack.c.b16 %v1024, %v1020
        %v1273 = vpack.c.b16 %v1025, %v1021
        %v1274 = vpack.c.b16 %v1026, %v1022
        %v1275 = vpack.c.b16 %v1027, %v1023
        %v1276 = vpack.c.b16 %v1032, %v1028
        %v1277 = vpack.c.b16 %v1033, %v1029
        %v1278 = vpack.c.b16 %v1034, %v1030
        %v1279 = vpack.c.b16 %v1035, %v1031
        %v1280 = vpack.c.b16 %v1040, %v1036
        %v1281 = vpack.c.b16 %v1041, %v1037
        %v1282 = vpack.c.b16 %v1042, %v1038
        %v1283 = vpack.c.b16 %v1043, %v1039
        %v1284 = vpack.c.b16 %v1048, %v1044
        %v1285 = vpack.c.b16 %v1049, %v1045
        %v1286 = vpack.c.b16 %v1050, %v1046
        %v1287 = vpack.c.b16 %v1051, %v1047
        %v1288 = vpack.c.b16 %v1056, %v1052
        %v1289 = vpack.c.b16 %v1057, %v1053
        %v1290 = vpack.c.b16 %v1058, %v1054
        %v1291 = vpack.c.b16 %v1059, %v1055
        %v1292 = vpack.c.b16 %v1064, %v1060
        %v1293 = vpack.c.b16 %v1065, %v1061
        %v1294 = vpack.c.b16 %v1066, %v1062
        %v1295 = vpack.c.b16 %v1067, %v1063
        %v1296 = vpack.c.b16 %v1072, %v1068
        %v1297 = vpack.c.b16 %v1073, %v1069
        %v1298 = vpack.c.b16 %v1074, %v1070
        %v1299 = vpack.c.b16 %v1075, %v1071
        %v1300 = vpack.c.b16 %v1080, %v1076
        %v1301 = vpack.c.b16 %v1081, %v1077
        %v1302 = vpack.c.b16 %v1082, %v1078
        %v1303 = vpack.c.b16 %v1083, %v1079
        %v1304 = vpack.c.b16 %v1088, %v1084
        %v1305 = vpack.c.b16 %v1089, %v1085
        %v1306 = vpack.c.b16 %v1090, %v1086
        %v1307 = vpack.c.b16 %v1091, %v1087
        %v1308 = vpack.c.b16 %v1096, %v1092
        %v1309 = vpack.c.b16 %v1097, %v1093
        %v1310 = vpack.c.b16 %v1098, %v1094
        %v1311 = vpack.c.b16 %v1099, %v1095
        %v1312 = vpack.c.b16 %v1104, %v1100
        %v1313 = vpack.c.b16 %v1105, %v1101
        %v1314 = vpack.c.b16 %v1106, %v1102
        %v1315 = vpack.c.b16 %v1107, %v1103
        %v1316 = vpack.c.b16 %v1112, %v1108
        %v1317 = vpack.c.b16 %v1113, %v1109
        %v1318 = vpack.c.b16 %v1114, %v1110
        %v1319 = vpack.c.b16 %v1115, %v1111
        %v1320 = vpack.c.b16 %v1120, %v1116
        %v1321 = vpack.c.b16 %v1121, %v1117
        %v1322 = vpack.c.b16 %v1122, %v1118
        %v1323 = vpack.c.b16 %v1123, %v1119
        %v1324 = vpack.c.b16 %v1128, %v1124
        %v1325 = vpack.c.b16 %v1129, %v1125
        %v1326 = vpack.c.b16 %v1130, %v1126
        %v1327 = vpack.c.b16 %v1131, %v1127
        %v1328 = vpack.c.b16 %v1136, %v1132
        %v1329 = vpack.c.b16 %v1137, %v1133
        %v1330 = vpack.c.b16 %v1138, %v1134
        %v1331 = vpack.c.b16 %v1139, %v1135
        %v1332 = vpack.c.b16 %v1144, %v1140
        %v1333 = vpack.c.b16 %v1145, %v1141
        %v1334 = vpack.c.b16 %v1146, %v1142
        %v1335 = vpack.c.b16 %v1147, %v1143
        %v1336 = vpack.c.b16 %v1152, %v1148
        %v1337 = vpack.c.b16 %v1153, %v1149
        %v1338 = vpack.c.b16 %v1154, %v1150
        %v1339 = vpack.c.b16 %v1155, %v1151
        %v1340 = vpack.c.b16 %v1160, %v1156
        %v1341 = vpack.c.b16 %v1161, %v1157
        %v1342 = vpack.c.b16 %v1162, %v1158
        %v1343 = vpack.c.b16 %v1163, %v1159
        %v1344 = vpack.c.b16 %v1168, %v1164
        %v1345 = vpack.c.b16 %v1169, %v1165
        %v1346 = vpack.c.b16 %v1170, %v1166
        %v1347 = vpack.c.b16 %v1171, %v1167
        %v1348 = vpack.c.b16 %v1176, %v1172
        %v1349 = vpack.c.b16 %v1177, %v1173
        %v1350 = vpack.c.b16 %v1178, %v1174
        %v1351 = vpack.c.b16 %v1179, %v1175
        %v1352 = vpack.c.b16 %v1184, %v1180
        %v1353 = vpack.c.b16 %v1185, %v1181
        %v1354 = vpack.c.b16 %v1186, %v1182
        %v1355 = vpack.c.b16 %v1187, %v1183
        %v1356 = vpack.c.b16 %v1192, %v1188
        %v1357 = vpack.c.b16 %v1193, %v1189
        %v1358 = vpack.c.b16 %v1194, %v1190
        %v1359 = vpack.c.b16 %v1195, %v1191
        %v1360 = vpack.c.b16 %v1200, %v1196
        %v1361 = vpack.c.b16 %v1201, %v1197
        %v1362 = vpack.c.b16 %v1202, %v1198
        %v1363 = vpack.c.b16 %v1203, %v1199
        %v1364 = vpack.c.b16 %v1208, %v1204
        %v1365 = vpack.c.b16 %v1209, %v1205
        %v1366 = vpack.c.b16 %v1210, %v1206
        %v1367 = vpack.c.b16 %v1211, %v1207
        %v1368 = vpack.c.b16 %v1216, %v1212
        %v1369 = vpack.c.b16 %v1217, %v1213
        %v1370 = vpack.c.b16 %v1218, %v1214
        %v1371 = vpack.c.b16 %v1219, %v1215
        %v1372 = vpack.c.b16 %v1224, %v1220
        %v1373 = vpack.c.b16 %v1225, %v1221
        %v1374 = vpack.c.b16 %v1226, %v1222
        %v1375 = vpack.c.b16 %v1227, %v1223
        %v1376 = vpack.c.b16 %v1232, %v1228
        %v1377 = vpack.c.b16 %v1233, %v1229
        %v1378 = vpack.c.b16 %v1234, %v1230
        %v1379 = vpack.c.b16 %v1235, %v1231
        %v1380 = vpack.c.b16 %v1240, %v1236
        %v1381 = vpack.c.b16 %v1241, %v1237
        %v1382 = vpack.c.b16 %v1242, %v1238
        %v1383 = vpack.c.b16 %v1243, %v1239
        %v1384 = vpack.c.b16 %v1248, %v1244
        %v1385 = vpack.c.b16 %v1249, %v1245
        %v1386 = vpack.c.b16 %v1250, %v1246
        %v1387 = vpack.c.b16 %v1251, %v1247
        %v1388 = vpack.c.b16 %v1256, %v1252
        %v1389 = vpack.c.b16 %v1257, %v1253
        %v1390 = vpack.c.b16 %v1258, %v1254
        %v1391 = vpack.c.b16 %v1259, %v1255
        %v1392 = vpack.c.b16 %v1264, %v1260
        %v1393 = vpack.c.b16 %v1265, %v1261
        %v1394 = vpack.c.b16 %v1266, %v1262
        %v1395 = vpack.c.b16 %v1267, %v1263
        %1524 = vmatprep.subr.bf16.mxu0 0
        %1525 = vmatpush1.bf16.msra.mxu0 %v340
        %1526 = vmatprep.subr.bf16.mxu0 0
        %1527 = vmatpush1.bf16.msra.mxu0 %v341
        %1528 = vmatprep.subr.bf16.mxu0 0
        %1529 = vmatpush1.bf16.msra.mxu0 %v342
        %1530 = vmatprep.subr.bf16.mxu0 0
        %1531 = vmatpush1.bf16.msra.mxu0 %v343
        %1532 = vmatprep.subr.bf16.mxu0 0
        %1533 = vmatpush1.bf16.msra.mxu0 %v344
        %1534 = vmatprep.subr.bf16.mxu0 0
        %1535 = vmatpush1.bf16.msra.mxu0 %v345
        %1536 = vmatprep.subr.bf16.mxu0 0
        %1537 = vmatpush1.bf16.msra.mxu0 %v346
        %1538 = vmatprep.subr.bf16.mxu0 0
        %1539 = vmatpush1.bf16.msra.mxu0 %v347
        %1540 = vmatprep.subr.bf16.mxu0 0
        %1541 = vmatpush1.bf16.msra.mxu0 %v348
        %1542 = vmatprep.subr.bf16.mxu0 0
        %1543 = vmatpush1.bf16.msra.mxu0 %v349
        %1544 = vmatprep.subr.bf16.mxu0 0
        %1545 = vmatpush1.bf16.msra.mxu0 %v350
        %1546 = vmatprep.subr.bf16.mxu0 0
        %1547 = vmatpush1.bf16.msra.mxu0 %v351
        %1548 = vmatprep.subr.bf16.mxu0 0
        %1549 = vmatpush1.bf16.msra.mxu0 %v352
        %1550 = vmatprep.subr.bf16.mxu0 0
        %1551 = vmatpush1.bf16.msra.mxu0 %v353
        %1552 = vmatprep.subr.bf16.mxu0 0
        %1553 = vmatpush1.bf16.msra.mxu0 %v354
        %1554 = vmatprep.subr.bf16.mxu0 0
        %1555 = vmatpush1.bf16.msra.mxu0 %v355
        %1556 = vmatprep.mubr.bf16.mxu0 %v1269
        %1557 = vmatmul.mubr.bf16.gmra.mrb[0].mxu0 %v1268
        %v1558 = vpop.f32.mrb[0].mxu0
        %v1559 = vadd.f32 %v567, %v1558
        %v1560 = vpop.f32.mrb[0].mxu0
        %v1561 = vpop.f32.mrb[0].mxu0
        %v1562 = vadd.f32 %v572, %v1561
        %v1563 = vpop.f32.mrb[0].mxu0
        %1564 = vmatprep.mubr.bf16.mxu0 %v1273
        %1565 = vmatmul.mubr.bf16.gmra.mrb[0].mxu0 %v1272
        %v1566 = vpop.f32.mrb[0].mxu0
        %v1567 = vadd.f32 %v577, %v1566
        %v1568 = vpop.f32.mrb[0].mxu0
        %v1569 = vpop.f32.mrb[0].mxu0
        %v1570 = vadd.f32 %v582, %v1569
        %v1571 = vpop.f32.mrb[0].mxu0
        %1572 = vmatprep.mubr.bf16.mxu0 %v1277
        %1573 = vmatmul.mubr.bf16.gmra.mrb[0].mxu0 %v1276
        %v1574 = vpop.f32.mrb[0].mxu0
        %v1575 = vadd.f32 %v587, %v1574
        %v1576 = vpop.f32.mrb[0].mxu0
        %v1577 = vpop.f32.mrb[0].mxu0
        %v1578 = vadd.f32 %v592, %v1577
        %v1579 = vpop.f32.mrb[0].mxu0
        %1580 = vmatprep.mubr.bf16.mxu0 %v1281
        %1581 = vmatmul.mubr.bf16.gmra.mrb[0].mxu0 %v1280
        %v1582 = vpop.f32.mrb[0].mxu0
        %v1583 = vadd.f32 %v597, %v1582
        %v1584 = vpop.f32.mrb[0].mxu0
        %v1585 = vpop.f32.mrb[0].mxu0
        %v1586 = vadd.f32 %v602, %v1585
        %v1587 = vpop.f32.mrb[0].mxu0
        %1588 = vmatprep.mubr.bf16.mxu0 %v1285
        %1589 = vmatmul.mubr.bf16.gmra.mrb[0].mxu0 %v1284
        %v1590 = vpop.f32.mrb[0].mxu0
        %v1591 = vadd.f32 %v607, %v1590
        %v1592 = vpop.f32.mrb[0].mxu0
        %v1593 = vpop.f32.mrb[0].mxu0
        %v1594 = vadd.f32 %v612, %v1593
        %v1595 = vpop.f32.mrb[0].mxu0
        %1596 = vmatprep.mubr.bf16.mxu0 %v1289
        %1597 = vmatmul.mubr.bf16.gmra.mrb[0].mxu0 %v1288
        %v1598 = vpop.f32.mrb[0].mxu0
        %v1599 = vadd.f32 %v617, %v1598
        %v1600 = vpop.f32.mrb[0].mxu0
        %v1601 = vpop.f32.mrb[0].mxu0
        %v1602 = vadd.f32 %v622, %v1601
        %v1603 = vpop.f32.mrb[0].mxu0
        %1604 = vmatprep.mubr.bf16.mxu0 %v1293
        %1605 = vmatmul.mubr.bf16.gmra.mrb[0].mxu0 %v1292
        %v1606 = vpop.f32.mrb[0].mxu0
        %v1607 = vadd.f32 %v627, %v1606
        %v1608 = vpop.f32.mrb[0].mxu0
        %v1609 = vpop.f32.mrb[0].mxu0
        %v1610 = vadd.f32 %v632, %v1609
        %v1611 = vpop.f32.mrb[0].mxu0
        %1612 = vmatprep.mubr.bf16.mxu0 %v1297
        %1613 = vmatmul.mubr.bf16.gmra.mrb[0].mxu0 %v1296
        %v1614 = vpop.f32.mrb[0].mxu0
        %v1615 = vadd.f32 %v637, %v1614
        %v1616 = vpop.f32.mrb[0].mxu0
        %v1617 = vpop.f32.mrb[0].mxu0
        %v1618 = vadd.f32 %v642, %v1617
        %v1619 = vpop.f32.mrb[0].mxu0
        %1620 = vmatprep.mubr.bf16.mxu0 %v1301
        %1621 = vmatmul.mubr.bf16.gmra.mrb[0].mxu0 %v1300
        %v1622 = vpop.f32.mrb[0].mxu0
        %v1623 = vadd.f32 %v647, %v1622
        %v1624 = vpop.f32.mrb[0].mxu0
        %v1625 = vpop.f32.mrb[0].mxu0
        %v1626 = vadd.f32 %v652, %v1625
        %v1627 = vpop.f32.mrb[0].mxu0
        %1628 = vmatprep.mubr.bf16.mxu0 %v1305
        %1629 = vmatmul.mubr.bf16.gmra.mrb[0].mxu0 %v1304
        %v1630 = vpop.f32.mrb[0].mxu0
        %v1631 = vadd.f32 %v657, %v1630
        %v1632 = vpop.f32.mrb[0].mxu0
        %v1633 = vpop.f32.mrb[0].mxu0
        %v1634 = vadd.f32 %v662, %v1633
        %v1635 = vpop.f32.mrb[0].mxu0
        %1636 = vmatprep.mubr.bf16.mxu0 %v1309
        %1637 = vmatmul.mubr.bf16.gmra.mrb[0].mxu0 %v1308
        %v1638 = vpop.f32.mrb[0].mxu0
        %v1639 = vadd.f32 %v667, %v1638
        %v1640 = vpop.f32.mrb[0].mxu0
        %v1641 = vpop.f32.mrb[0].mxu0
        %v1642 = vadd.f32 %v672, %v1641
        %v1643 = vpop.f32.mrb[0].mxu0
        %1644 = vmatprep.mubr.bf16.mxu0 %v1313
        %1645 = vmatmul.mubr.bf16.gmra.mrb[0].mxu0 %v1312
        %v1646 = vpop.f32.mrb[0].mxu0
        %v1647 = vadd.f32 %v677, %v1646
        %v1648 = vpop.f32.mrb[0].mxu0
        %v1649 = vpop.f32.mrb[0].mxu0
        %v1650 = vadd.f32 %v682, %v1649
        %v1651 = vpop.f32.mrb[0].mxu0
        %1652 = vmatprep.mubr.bf16.mxu0 %v1317
        %1653 = vmatmul.mubr.bf16.gmra.mrb[0].mxu0 %v1316
        %v1654 = vpop.f32.mrb[0].mxu0
        %v1655 = vadd.f32 %v687, %v1654
        %v1656 = vpop.f32.mrb[0].mxu0
        %v1657 = vpop.f32.mrb[0].mxu0
        %v1658 = vadd.f32 %v692, %v1657
        %v1659 = vpop.f32.mrb[0].mxu0
        %1660 = vmatprep.mubr.bf16.mxu0 %v1321
        %1661 = vmatmul.mubr.bf16.gmra.mrb[0].mxu0 %v1320
        %v1662 = vpop.f32.mrb[0].mxu0
        %v1663 = vadd.f32 %v697, %v1662
        %v1664 = vpop.f32.mrb[0].mxu0
        %v1665 = vpop.f32.mrb[0].mxu0
        %v1666 = vadd.f32 %v702, %v1665
        %v1667 = vpop.f32.mrb[0].mxu0
        %1668 = vmatprep.mubr.bf16.mxu0 %v1325
        %1669 = vmatmul.mubr.bf16.gmra.mrb[0].mxu0 %v1324
        %v1670 = vpop.f32.mrb[0].mxu0
        %v1671 = vadd.f32 %v707, %v1670
        %v1672 = vpop.f32.mrb[0].mxu0
        %v1673 = vpop.f32.mrb[0].mxu0
        %v1674 = vadd.f32 %v712, %v1673
        %v1675 = vpop.f32.mrb[0].mxu0
        %1676 = vmatprep.mubr.bf16.mxu0 %v1329
        %1677 = vmatmul.mubr.bf16.gmra.mrb[0].mxu0 %v1328
        %v1678 = vpop.f32.mrb[0].mxu0
        %v1679 = vadd.f32 %v717, %v1678
        %v1680 = vpop.f32.mrb[0].mxu0
        %v1681 = vpop.f32.mrb[0].mxu0
        %v1682 = vadd.f32 %v722, %v1681
        %v1683 = vpop.f32.mrb[0].mxu0
        %1684 = vmatprep.mubr.bf16.mxu0 %v1333
        %1685 = vmatmul.mubr.bf16.gmra.mrb[0].mxu0 %v1332
        %v1686 = vpop.f32.mrb[0].mxu0
        %v1687 = vadd.f32 %v727, %v1686
        %v1688 = vpop.f32.mrb[0].mxu0
        %v1689 = vpop.f32.mrb[0].mxu0
        %v1690 = vadd.f32 %v732, %v1689
        %v1691 = vpop.f32.mrb[0].mxu0
        %1692 = vmatprep.mubr.bf16.mxu0 %v1337
        %1693 = vmatmul.mubr.bf16.gmra.mrb[0].mxu0 %v1336
        %v1694 = vpop.f32.mrb[0].mxu0
        %v1695 = vadd.f32 %v737, %v1694
        %v1696 = vpop.f32.mrb[0].mxu0
        %v1697 = vpop.f32.mrb[0].mxu0
        %v1698 = vadd.f32 %v742, %v1697
        %v1699 = vpop.f32.mrb[0].mxu0
        %1700 = vmatprep.mubr.bf16.mxu0 %v1341
        %1701 = vmatmul.mubr.bf16.gmra.mrb[0].mxu0 %v1340
        %v1702 = vpop.f32.mrb[0].mxu0
        %v1703 = vadd.f32 %v747, %v1702
        %v1704 = vpop.f32.mrb[0].mxu0
        %v1705 = vpop.f32.mrb[0].mxu0
        %v1706 = vadd.f32 %v752, %v1705
        %v1707 = vpop.f32.mrb[0].mxu0
        %1708 = vmatprep.mubr.bf16.mxu0 %v1345
        %1709 = vmatmul.mubr.bf16.gmra.mrb[0].mxu0 %v1344
        %v1710 = vpop.f32.mrb[0].mxu0
        %v1711 = vadd.f32 %v757, %v1710
        %v1712 = vpop.f32.mrb[0].mxu0
        %v1713 = vpop.f32.mrb[0].mxu0
        %v1714 = vadd.f32 %v762, %v1713
        %v1715 = vpop.f32.mrb[0].mxu0
        %1716 = vmatprep.mubr.bf16.mxu0 %v1349
        %1717 = vmatmul.mubr.bf16.gmra.mrb[0].mxu0 %v1348
        %v1718 = vpop.f32.mrb[0].mxu0
        %v1719 = vadd.f32 %v767, %v1718
        %v1720 = vpop.f32.mrb[0].mxu0
        %v1721 = vpop.f32.mrb[0].mxu0
        %v1722 = vadd.f32 %v772, %v1721
        %v1723 = vpop.f32.mrb[0].mxu0
        %1724 = vmatprep.mubr.bf16.mxu0 %v1353
        %1725 = vmatmul.mubr.bf16.gmra.mrb[0].mxu0 %v1352
        %v1726 = vpop.f32.mrb[0].mxu0
        %v1727 = vadd.f32 %v777, %v1726
        %v1728 = vpop.f32.mrb[0].mxu0
        %v1729 = vpop.f32.mrb[0].mxu0
        %v1730 = vadd.f32 %v782, %v1729
        %v1731 = vpop.f32.mrb[0].mxu0
        %1732 = vmatprep.mubr.bf16.mxu0 %v1357
        %1733 = vmatmul.mubr.bf16.gmra.mrb[0].mxu0 %v1356
        %v1734 = vpop.f32.mrb[0].mxu0
        %v1735 = vadd.f32 %v787, %v1734
        %v1736 = vpop.f32.mrb[0].mxu0
        %v1737 = vpop.f32.mrb[0].mxu0
        %v1738 = vadd.f32 %v792, %v1737
        %v1739 = vpop.f32.mrb[0].mxu0
        %1740 = vmatprep.mubr.bf16.mxu0 %v1361
        %1741 = vmatmul.mubr.bf16.gmra.mrb[0].mxu0 %v1360
        %v1742 = vpop.f32.mrb[0].mxu0
        %v1743 = vadd.f32 %v797, %v1742
        %v1744 = vpop.f32.mrb[0].mxu0
        %v1745 = vpop.f32.mrb[0].mxu0
        %v1746 = vadd.f32 %v802, %v1745
        %v1747 = vpop.f32.mrb[0].mxu0
        %1748 = vmatprep.mubr.bf16.mxu0 %v1365
        %1749 = vmatmul.mubr.bf16.gmra.mrb[0].mxu0 %v1364
        %v1750 = vpop.f32.mrb[0].mxu0
        %v1751 = vadd.f32 %v807, %v1750
        %v1752 = vpop.f32.mrb[0].mxu0
        %v1753 = vpop.f32.mrb[0].mxu0
        %v1754 = vadd.f32 %v812, %v1753
        %v1755 = vpop.f32.mrb[0].mxu0
        %1756 = vmatprep.mubr.bf16.mxu0 %v1369
        %1757 = vmatmul.mubr.bf16.gmra.mrb[0].mxu0 %v1368
        %v1758 = vpop.f32.mrb[0].mxu0
        %v1759 = vadd.f32 %v817, %v1758
        %v1760 = vpop.f32.mrb[0].mxu0
        %v1761 = vpop.f32.mrb[0].mxu0
        %v1762 = vadd.f32 %v822, %v1761
        %v1763 = vpop.f32.mrb[0].mxu0
        %1764 = vmatprep.mubr.bf16.mxu0 %v1373
        %1765 = vmatmul.mubr.bf16.gmra.mrb[0].mxu0 %v1372
        %v1766 = vpop.f32.mrb[0].mxu0
        %v1767 = vadd.f32 %v827, %v1766
        %v1768 = vpop.f32.mrb[0].mxu0
        %v1769 = vpop.f32.mrb[0].mxu0
        %v1770 = vadd.f32 %v832, %v1769
        %v1771 = vpop.f32.mrb[0].mxu0
        %1772 = vmatprep.mubr.bf16.mxu0 %v1377
        %1773 = vmatmul.mubr.bf16.gmra.mrb[0].mxu0 %v1376
        %v1774 = vpop.f32.mrb[0].mxu0
        %v1775 = vadd.f32 %v837, %v1774
        %v1776 = vpop.f32.mrb[0].mxu0
        %v1777 = vpop.f32.mrb[0].mxu0
        %v1778 = vadd.f32 %v842, %v1777
        %v1779 = vpop.f32.mrb[0].mxu0
        %1780 = vmatprep.mubr.bf16.mxu0 %v1381
        %1781 = vmatmul.mubr.bf16.gmra.mrb[0].mxu0 %v1380
        %v1782 = vpop.f32.mrb[0].mxu0
        %v1783 = vadd.f32 %v847, %v1782
        %v1784 = vpop.f32.mrb[0].mxu0
        %v1785 = vpop.f32.mrb[0].mxu0
        %v1786 = vadd.f32 %v852, %v1785
        %v1787 = vpop.f32.mrb[0].mxu0
        %1788 = vmatprep.mubr.bf16.mxu0 %v1385
        %1789 = vmatmul.mubr.bf16.gmra.mrb[0].mxu0 %v1384
        %v1790 = vpop.f32.mrb[0].mxu0
        %v1791 = vadd.f32 %v857, %v1790
        %v1792 = vpop.f32.mrb[0].mxu0
        %v1793 = vpop.f32.mrb[0].mxu0
        %v1794 = vadd.f32 %v862, %v1793
        %v1795 = vpop.f32.mrb[0].mxu0
        %1796 = vmatprep.mubr.bf16.mxu0 %v1389
        %1797 = vmatmul.mubr.bf16.gmra.mrb[0].mxu0 %v1388
        %v1798 = vpop.f32.mrb[0].mxu0
        %v1799 = vadd.f32 %v867, %v1798
        %v1800 = vpop.f32.mrb[0].mxu0
        %v1801 = vpop.f32.mrb[0].mxu0
        %v1802 = vadd.f32 %v872, %v1801
        %v1803 = vpop.f32.mrb[0].mxu0
        %1804 = vmatprep.mubr.bf16.mxu0 %v1393
        %1805 = vmatmul.mubr.bf16.gmra.mrb[0].mxu0 %v1392
        %v1806 = vpop.f32.mrb[0].mxu0
        %v1807 = vadd.f32 %v877, %v1806
        %v1808 = vpop.f32.mrb[0].mxu0
        %v1809 = vpop.f32.mrb[0].mxu0
        %v1810 = vadd.f32 %v882, %v1809
        %v1811 = vpop.f32.mrb[0].mxu0
        %1812 = vdwg.mxu0
        %1813 = vmatprep.subr.bf16.mxu0 0
        %1814 = vmatpush1.bf16.msra.mxu0 %v356
        %1815 = vmatprep.subr.bf16.mxu0 0
        %1816 = vmatpush1.bf16.msra.mxu0 %v357
        %1817 = vmatprep.subr.bf16.mxu0 0
        %1818 = vmatpush1.bf16.msra.mxu0 %v358
        %1819 = vmatprep.subr.bf16.mxu0 0
        %1820 = vmatpush1.bf16.msra.mxu0 %v359
        %1821 = vmatprep.subr.bf16.mxu0 0
        %1822 = vmatpush1.bf16.msra.mxu0 %v360
        %1823 = vmatprep.subr.bf16.mxu0 0
        %1824 = vmatpush1.bf16.msra.mxu0 %v361
        %1825 = vmatprep.subr.bf16.mxu0 0
        %1826 = vmatpush1.bf16.msra.mxu0 %v362
        %1827 = vmatprep.subr.bf16.mxu0 0
        %1828 = vmatpush1.bf16.msra.mxu0 %v363
        %1829 = vmatprep.subr.bf16.mxu0 0
        %1830 = vmatpush1.bf16.msra.mxu0 %v364
        %1831 = vmatprep.subr.bf16.mxu0 0
        %1832 = vmatpush1.bf16.msra.mxu0 %v365
        %1833 = vmatprep.subr.bf16.mxu0 0
        %1834 = vmatpush1.bf16.msra.mxu0 %v366
        %1835 = vmatprep.subr.bf16.mxu0 0
        %1836 = vmatpush1.bf16.msra.mxu0 %v367
        %1837 = vmatprep.subr.bf16.mxu0 0
        %1838 = vmatpush1.bf16.msra.mxu0 %v368
        %1839 = vmatprep.subr.bf16.mxu0 0
        %1840 = vmatpush1.bf16.msra.mxu0 %v369
        %1841 = vmatprep.subr.bf16.mxu0 0
        %1842 = vmatpush1.bf16.msra.mxu0 %v370
        %1843 = vmatprep.subr.bf16.mxu0 0
        %1844 = vmatpush1.bf16.msra.mxu0 %v371
        %1845 = vmatprep.mubr.bf16.mxu0 %v1271
        %1846 = vmatmul.mubr.bf16.gmra.mrb[0].mxu0 %v1270
        %v1847 = vpop.f32.mrb[0].mxu0
        %v1848 = vadd.f32 %v1559, %v1847
        %v1849 = vpop.f32.mrb[0].mxu0
        %v1850 = vpop.f32.mrb[0].mxu0
        %v1851 = vadd.f32 %v1562, %v1850
        %v1852 = vpop.f32.mrb[0].mxu0
        %1853 = vmatprep.mubr.bf16.mxu0 %v1275
        %1854 = vmatmul.mubr.bf16.gmra.mrb[0].mxu0 %v1274
        %v1855 = vpop.f32.mrb[0].mxu0
        %v1856 = vadd.f32 %v1567, %v1855
        %v1857 = vpop.f32.mrb[0].mxu0
        %v1858 = vpop.f32.mrb[0].mxu0
        %v1859 = vadd.f32 %v1570, %v1858
        %v1860 = vpop.f32.mrb[0].mxu0
        %1861 = vmatprep.mubr.bf16.mxu0 %v1279
        %1862 = vmatmul.mubr.bf16.gmra.mrb[0].mxu0 %v1278
        %v1863 = vpop.f32.mrb[0].mxu0
        %v1864 = vadd.f32 %v1575, %v1863
        %v1865 = vpop.f32.mrb[0].mxu0
        %v1866 = vpop.f32.mrb[0].mxu0
        %v1867 = vadd.f32 %v1578, %v1866
        %v1868 = vpop.f32.mrb[0].mxu0
        %1869 = vmatprep.mubr.bf16.mxu0 %v1283
        %1870 = vmatmul.mubr.bf16.gmra.mrb[0].mxu0 %v1282
        %v1871 = vpop.f32.mrb[0].mxu0
        %v1872 = vadd.f32 %v1583, %v1871
        %v1873 = vpop.f32.mrb[0].mxu0
        %v1874 = vpop.f32.mrb[0].mxu0
        %v1875 = vadd.f32 %v1586, %v1874
        %v1876 = vpop.f32.mrb[0].mxu0
        %1877 = vmatprep.mubr.bf16.mxu0 %v1287
        %1878 = vmatmul.mubr.bf16.gmra.mrb[0].mxu0 %v1286
        %v1879 = vpop.f32.mrb[0].mxu0
        %v1880 = vadd.f32 %v1591, %v1879
        %v1881 = vpop.f32.mrb[0].mxu0
        %v1882 = vpop.f32.mrb[0].mxu0
        %v1883 = vadd.f32 %v1594, %v1882
        %v1884 = vpop.f32.mrb[0].mxu0
        %1885 = vmatprep.mubr.bf16.mxu0 %v1291
        %1886 = vmatmul.mubr.bf16.gmra.mrb[0].mxu0 %v1290
        %v1887 = vpop.f32.mrb[0].mxu0
        %v1888 = vadd.f32 %v1599, %v1887
        %v1889 = vpop.f32.mrb[0].mxu0
        %v1890 = vpop.f32.mrb[0].mxu0
        %v1891 = vadd.f32 %v1602, %v1890
        %v1892 = vpop.f32.mrb[0].mxu0
        %1893 = vmatprep.mubr.bf16.mxu0 %v1295
        %1894 = vmatmul.mubr.bf16.gmra.mrb[0].mxu0 %v1294
        %v1895 = vpop.f32.mrb[0].mxu0
        %v1896 = vadd.f32 %v1607, %v1895
        %v1897 = vpop.f32.mrb[0].mxu0
        %v1898 = vpop.f32.mrb[0].mxu0
        %v1899 = vadd.f32 %v1610, %v1898
        %v1900 = vpop.f32.mrb[0].mxu0
        %1901 = vmatprep.mubr.bf16.mxu0 %v1299
        %1902 = vmatmul.mubr.bf16.gmra.mrb[0].mxu0 %v1298
        %v1903 = vpop.f32.mrb[0].mxu0
        %v1904 = vadd.f32 %v1615, %v1903
        %v1905 = vpop.f32.mrb[0].mxu0
        %v1906 = vpop.f32.mrb[0].mxu0
        %v1907 = vadd.f32 %v1618, %v1906
        %v1908 = vpop.f32.mrb[0].mxu0
        %1909 = vmatprep.mubr.bf16.mxu0 %v1303
        %1910 = vmatmul.mubr.bf16.gmra.mrb[0].mxu0 %v1302
        %v1911 = vpop.f32.mrb[0].mxu0
        %v1912 = vadd.f32 %v1623, %v1911
        %v1913 = vpop.f32.mrb[0].mxu0
        %v1914 = vpop.f32.mrb[0].mxu0
        %v1915 = vadd.f32 %v1626, %v1914
        %v1916 = vpop.f32.mrb[0].mxu0
        %1917 = vmatprep.mubr.bf16.mxu0 %v1307
        %1918 = vmatmul.mubr.bf16.gmra.mrb[0].mxu0 %v1306
        %v1919 = vpop.f32.mrb[0].mxu0
        %v1920 = vadd.f32 %v1631, %v1919
        %v1921 = vpop.f32.mrb[0].mxu0
        %v1922 = vpop.f32.mrb[0].mxu0
        %v1923 = vadd.f32 %v1634, %v1922
        %v1924 = vpop.f32.mrb[0].mxu0
        %1925 = vmatprep.mubr.bf16.mxu0 %v1311
        %1926 = vmatmul.mubr.bf16.gmra.mrb[0].mxu0 %v1310
        %v1927 = vpop.f32.mrb[0].mxu0
        %v1928 = vadd.f32 %v1639, %v1927
        %v1929 = vpop.f32.mrb[0].mxu0
        %v1930 = vpop.f32.mrb[0].mxu0
        %v1931 = vadd.f32 %v1642, %v1930
        %v1932 = vpop.f32.mrb[0].mxu0
        %1933 = vmatprep.mubr.bf16.mxu0 %v1315
        %1934 = vmatmul.mubr.bf16.gmra.mrb[0].mxu0 %v1314
        %v1935 = vpop.f32.mrb[0].mxu0
        %v1936 = vadd.f32 %v1647, %v1935
        %v1937 = vpop.f32.mrb[0].mxu0
        %v1938 = vpop.f32.mrb[0].mxu0
        %v1939 = vadd.f32 %v1650, %v1938
        %v1940 = vpop.f32.mrb[0].mxu0
        %1941 = vmatprep.mubr.bf16.mxu0 %v1319
        %1942 = vmatmul.mubr.bf16.gmra.mrb[0].mxu0 %v1318
        %v1943 = vpop.f32.mrb[0].mxu0
        %v1944 = vadd.f32 %v1655, %v1943
        %v1945 = vpop.f32.mrb[0].mxu0
        %v1946 = vpop.f32.mrb[0].mxu0
        %v1947 = vadd.f32 %v1658, %v1946
        %v1948 = vpop.f32.mrb[0].mxu0
        %1949 = vmatprep.mubr.bf16.mxu0 %v1323
        %1950 = vmatmul.mubr.bf16.gmra.mrb[0].mxu0 %v1322
        %v1951 = vpop.f32.mrb[0].mxu0
        %v1952 = vadd.f32 %v1663, %v1951
        %v1953 = vpop.f32.mrb[0].mxu0
        %v1954 = vpop.f32.mrb[0].mxu0
        %v1955 = vadd.f32 %v1666, %v1954
        %v1956 = vpop.f32.mrb[0].mxu0
        %1957 = vmatprep.mubr.bf16.mxu0 %v1327
        %1958 = vmatmul.mubr.bf16.gmra.mrb[0].mxu0 %v1326
        %v1959 = vpop.f32.mrb[0].mxu0
        %v1960 = vadd.f32 %v1671, %v1959
        %v1961 = vpop.f32.mrb[0].mxu0
        %v1962 = vpop.f32.mrb[0].mxu0
        %v1963 = vadd.f32 %v1674, %v1962
        %v1964 = vpop.f32.mrb[0].mxu0
        %1965 = vmatprep.mubr.bf16.mxu0 %v1331
        %1966 = vmatmul.mubr.bf16.gmra.mrb[0].mxu0 %v1330
        %v1967 = vpop.f32.mrb[0].mxu0
        %v1968 = vadd.f32 %v1679, %v1967
        %v1969 = vpop.f32.mrb[0].mxu0
        %v1970 = vpop.f32.mrb[0].mxu0
        %v1971 = vadd.f32 %v1682, %v1970
        %v1972 = vpop.f32.mrb[0].mxu0
        %1973 = vmatprep.mubr.bf16.mxu0 %v1335
        %1974 = vmatmul.mubr.bf16.gmra.mrb[0].mxu0 %v1334
        %v1975 = vpop.f32.mrb[0].mxu0
        %v1976 = vadd.f32 %v1687, %v1975
        %v1977 = vpop.f32.mrb[0].mxu0
        %v1978 = vpop.f32.mrb[0].mxu0
        %v1979 = vadd.f32 %v1690, %v1978
        %v1980 = vpop.f32.mrb[0].mxu0
        %1981 = vmatprep.mubr.bf16.mxu0 %v1339
        %1982 = vmatmul.mubr.bf16.gmra.mrb[0].mxu0 %v1338
        %v1983 = vpop.f32.mrb[0].mxu0
        %v1984 = vadd.f32 %v1695, %v1983
        %v1985 = vpop.f32.mrb[0].mxu0
        %v1986 = vpop.f32.mrb[0].mxu0
        %v1987 = vadd.f32 %v1698, %v1986
        %v1988 = vpop.f32.mrb[0].mxu0
        %1989 = vmatprep.mubr.bf16.mxu0 %v1343
        %1990 = vmatmul.mubr.bf16.gmra.mrb[0].mxu0 %v1342
        %v1991 = vpop.f32.mrb[0].mxu0
        %v1992 = vadd.f32 %v1703, %v1991
        %v1993 = vpop.f32.mrb[0].mxu0
        %v1994 = vpop.f32.mrb[0].mxu0
        %v1995 = vadd.f32 %v1706, %v1994
        %v1996 = vpop.f32.mrb[0].mxu0
        %1997 = vmatprep.mubr.bf16.mxu0 %v1347
        %1998 = vmatmul.mubr.bf16.gmra.mrb[0].mxu0 %v1346
        %v1999 = vpop.f32.mrb[0].mxu0
        %v2000 = vadd.f32 %v1711, %v1999
        %v2001 = vpop.f32.mrb[0].mxu0
        %v2002 = vpop.f32.mrb[0].mxu0
        %v2003 = vadd.f32 %v1714, %v2002
        %v2004 = vpop.f32.mrb[0].mxu0
        %2005 = vmatprep.mubr.bf16.mxu0 %v1351
        %2006 = vmatmul.mubr.bf16.gmra.mrb[0].mxu0 %v1350
        %v2007 = vpop.f32.mrb[0].mxu0
        %v2008 = vadd.f32 %v1719, %v2007
        %v2009 = vpop.f32.mrb[0].mxu0
        %v2010 = vpop.f32.mrb[0].mxu0
        %v2011 = vadd.f32 %v1722, %v2010
        %v2012 = vpop.f32.mrb[0].mxu0
        %2013 = vmatprep.mubr.bf16.mxu0 %v1355
        %2014 = vmatmul.mubr.bf16.gmra.mrb[0].mxu0 %v1354
        %v2015 = vpop.f32.mrb[0].mxu0
        %v2016 = vadd.f32 %v1727, %v2015
        %v2017 = vpop.f32.mrb[0].mxu0
        %v2018 = vpop.f32.mrb[0].mxu0
        %v2019 = vadd.f32 %v1730, %v2018
        %v2020 = vpop.f32.mrb[0].mxu0
        %2021 = vmatprep.mubr.bf16.mxu0 %v1359
        %2022 = vmatmul.mubr.bf16.gmra.mrb[0].mxu0 %v1358
        %v2023 = vpop.f32.mrb[0].mxu0
        %v2024 = vadd.f32 %v1735, %v2023
        %v2025 = vpop.f32.mrb[0].mxu0
        %v2026 = vpop.f32.mrb[0].mxu0
        %v2027 = vadd.f32 %v1738, %v2026
        %v2028 = vpop.f32.mrb[0].mxu0
        %2029 = vmatprep.mubr.bf16.mxu0 %v1363
        %2030 = vmatmul.mubr.bf16.gmra.mrb[0].mxu0 %v1362
        %v2031 = vpop.f32.mrb[0].mxu0
        %v2032 = vadd.f32 %v1743, %v2031
        %v2033 = vpop.f32.mrb[0].mxu0
        %v2034 = vpop.f32.mrb[0].mxu0
        %v2035 = vadd.f32 %v1746, %v2034
        %v2036 = vpop.f32.mrb[0].mxu0
        %2037 = vmatprep.mubr.bf16.mxu0 %v1367
        %2038 = vmatmul.mubr.bf16.gmra.mrb[0].mxu0 %v1366
        %v2039 = vpop.f32.mrb[0].mxu0
        %v2040 = vadd.f32 %v1751, %v2039
        %v2041 = vpop.f32.mrb[0].mxu0
        %v2042 = vpop.f32.mrb[0].mxu0
        %v2043 = vadd.f32 %v1754, %v2042
        %v2044 = vpop.f32.mrb[0].mxu0
        %2045 = vmatprep.mubr.bf16.mxu0 %v1371
        %2046 = vmatmul.mubr.bf16.gmra.mrb[0].mxu0 %v1370
        %v2047 = vpop.f32.mrb[0].mxu0
        %v2048 = vadd.f32 %v1759, %v2047
        %v2049 = vpop.f32.mrb[0].mxu0
        %v2050 = vpop.f32.mrb[0].mxu0
        %v2051 = vadd.f32 %v1762, %v2050
        %v2052 = vpop.f32.mrb[0].mxu0
        %2053 = vmatprep.mubr.bf16.mxu0 %v1375
        %2054 = vmatmul.mubr.bf16.gmra.mrb[0].mxu0 %v1374
        %v2055 = vpop.f32.mrb[0].mxu0
        %v2056 = vadd.f32 %v1767, %v2055
        %v2057 = vpop.f32.mrb[0].mxu0
        %v2058 = vpop.f32.mrb[0].mxu0
        %v2059 = vadd.f32 %v1770, %v2058
        %v2060 = vpop.f32.mrb[0].mxu0
        %2061 = vmatprep.mubr.bf16.mxu0 %v1379
        %2062 = vmatmul.mubr.bf16.gmra.mrb[0].mxu0 %v1378
        %v2063 = vpop.f32.mrb[0].mxu0
        %v2064 = vadd.f32 %v1775, %v2063
        %v2065 = vpop.f32.mrb[0].mxu0
        %v2066 = vpop.f32.mrb[0].mxu0
        %v2067 = vadd.f32 %v1778, %v2066
        %v2068 = vpop.f32.mrb[0].mxu0
        %2069 = vmatprep.mubr.bf16.mxu0 %v1383
        %2070 = vmatmul.mubr.bf16.gmra.mrb[0].mxu0 %v1382
        %v2071 = vpop.f32.mrb[0].mxu0
        %v2072 = vadd.f32 %v1783, %v2071
        %v2073 = vpop.f32.mrb[0].mxu0
        %v2074 = vpop.f32.mrb[0].mxu0
        %v2075 = vadd.f32 %v1786, %v2074
        %v2076 = vpop.f32.mrb[0].mxu0
        %2077 = vmatprep.mubr.bf16.mxu0 %v1387
        %2078 = vmatmul.mubr.bf16.gmra.mrb[0].mxu0 %v1386
        %v2079 = vpop.f32.mrb[0].mxu0
        %v2080 = vadd.f32 %v1791, %v2079
        %v2081 = vpop.f32.mrb[0].mxu0
        %v2082 = vpop.f32.mrb[0].mxu0
        %v2083 = vadd.f32 %v1794, %v2082
        %v2084 = vpop.f32.mrb[0].mxu0
        %2085 = vmatprep.mubr.bf16.mxu0 %v1391
        %2086 = vmatmul.mubr.bf16.gmra.mrb[0].mxu0 %v1390
        %v2087 = vpop.f32.mrb[0].mxu0
        %v2088 = vadd.f32 %v1799, %v2087
        %v2089 = vpop.f32.mrb[0].mxu0
        %v2090 = vpop.f32.mrb[0].mxu0
        %v2091 = vadd.f32 %v1802, %v2090
        %v2092 = vpop.f32.mrb[0].mxu0
        %2093 = vmatprep.mubr.bf16.mxu0 %v1395
        %2094 = vmatmul.mubr.bf16.gmra.mrb[0].mxu0 %v1394
        %v2095 = vpop.f32.mrb[0].mxu0
        %v2096 = vadd.f32 %v1807, %v2095
        %v2097 = vpop.f32.mrb[0].mxu0
        %v2098 = vpop.f32.mrb[0].mxu0
        %v2099 = vadd.f32 %v1810, %v2098
        %v2100 = vpop.f32.mrb[0].mxu0
        %2101 = vdwg.mxu0
        %v2102 = vmax.f32 %v1848, 0.0
        %v2103 = vmax.f32 %v1851, 0.0
        %v2104 = vmax.f32 %v1856, 0.0
        %v2105 = vmax.f32 %v1859, 0.0
        %v2106 = vmax.f32 %v1864, 0.0
        %v2107 = vmax.f32 %v1867, 0.0
        %v2108 = vmax.f32 %v1872, 0.0
        %v2109 = vmax.f32 %v1875, 0.0
        %v2110 = vmax.f32 %v1880, 0.0
        %v2111 = vmax.f32 %v1883, 0.0
        %v2112 = vmax.f32 %v1888, 0.0
        %v2113 = vmax.f32 %v1891, 0.0
        %v2114 = vmax.f32 %v1896, 0.0
        %v2115 = vmax.f32 %v1899, 0.0
        %v2116 = vmax.f32 %v1904, 0.0
        %v2117 = vmax.f32 %v1907, 0.0
        %v2118 = vmax.f32 %v1912, 0.0
        %v2119 = vmax.f32 %v1915, 0.0
        %v2120 = vmax.f32 %v1920, 0.0
        %v2121 = vmax.f32 %v1923, 0.0
        %v2122 = vmax.f32 %v1928, 0.0
        %v2123 = vmax.f32 %v1931, 0.0
        %v2124 = vmax.f32 %v1936, 0.0
        %v2125 = vmax.f32 %v1939, 0.0
        %v2126 = vmax.f32 %v1944, 0.0
        %v2127 = vmax.f32 %v1947, 0.0
        %v2128 = vmax.f32 %v1952, 0.0
        %v2129 = vmax.f32 %v1955, 0.0
        %v2130 = vmax.f32 %v1960, 0.0
        %v2131 = vmax.f32 %v1963, 0.0
        %v2132 = vmax.f32 %v1968, 0.0
        %v2133 = vmax.f32 %v1971, 0.0
        %v2134 = vmax.f32 %v1976, 0.0
        %v2135 = vmax.f32 %v1979, 0.0
        %v2136 = vmax.f32 %v1984, 0.0
        %v2137 = vmax.f32 %v1987, 0.0
        %v2138 = vmax.f32 %v1992, 0.0
        %v2139 = vmax.f32 %v1995, 0.0
        %v2140 = vmax.f32 %v2000, 0.0
        %v2141 = vmax.f32 %v2003, 0.0
        %v2142 = vmax.f32 %v2008, 0.0
        %v2143 = vmax.f32 %v2011, 0.0
        %v2144 = vmax.f32 %v2016, 0.0
        %v2145 = vmax.f32 %v2019, 0.0
        %v2146 = vmax.f32 %v2024, 0.0
        %v2147 = vmax.f32 %v2027, 0.0
        %v2148 = vmax.f32 %v2032, 0.0
        %v2149 = vmax.f32 %v2035, 0.0
        %v2150 = vmax.f32 %v2040, 0.0
        %v2151 = vmax.f32 %v2043, 0.0
        %v2152 = vmax.f32 %v2048, 0.0
        %v2153 = vmax.f32 %v2051, 0.0
        %v2154 = vmax.f32 %v2056, 0.0
        %v2155 = vmax.f32 %v2059, 0.0
        %v2156 = vmax.f32 %v2064, 0.0
        %v2157 = vmax.f32 %v2067, 0.0
        %v2158 = vmax.f32 %v2072, 0.0
        %v2159 = vmax.f32 %v2075, 0.0
        %v2160 = vmax.f32 %v2080, 0.0
        %v2161 = vmax.f32 %v2083, 0.0
        %v2162 = vmax.f32 %v2088, 0.0
        %v2163 = vmax.f32 %v2091, 0.0
        %v2164 = vmax.f32 %v2096, 0.0
        %v2165 = vmax.f32 %v2099, 0.0
        %v2166 = vld [vmem:[%s3] sm:$0xff]
        %v2167 = vld [vmem:[%s3 + $0x8] sm:$0xff]
        %v2168 = vld [vmem:[%s3 + $0x10] sm:$0xff]
        %v2169 = vld [vmem:[%s3 + $0x18] sm:$0xff]
        %v2170 = vld [vmem:[%s3 + $0x20] sm:$0xff]
        %v2171 = vld [vmem:[%s3 + $0x28] sm:$0xff]
        %v2172 = vld [vmem:[%s3 + $0x30] sm:$0xff]
        %v2173 = vld [vmem:[%s3 + $0x38] sm:$0xff]
        %v2174 = vld [vmem:[%s3 + $0x40] sm:$0xff]
        %v2175 = vld [vmem:[%s3 + $0x48] sm:$0xff]
        %v2176 = vld [vmem:[%s3 + $0x50] sm:$0xff]
        %v2177 = vld [vmem:[%s3 + $0x58] sm:$0xff]
        %v2178 = vld [vmem:[%s3 + $0x60] sm:$0xff]
        %v2179 = vld [vmem:[%s3 + $0x68] sm:$0xff]
        %v2180 = vld [vmem:[%s3 + $0x70] sm:$0xff]
        %v2181 = vld [vmem:[%s3 + $0x78] sm:$0xff]
        %v2182 = vld [vmem:[%s3 + $0x80] sm:$0xff]
        %v2183 = vld [vmem:[%s3 + $0x88] sm:$0xff]
        %v2184 = vld [vmem:[%s3 + $0x90] sm:$0xff]
        %v2185 = vld [vmem:[%s3 + $0x98] sm:$0xff]
        %v2186 = vld [vmem:[%s3 + $0xa0] sm:$0xff]
        %v2187 = vld [vmem:[%s3 + $0xa8] sm:$0xff]
        %v2188 = vld [vmem:[%s3 + $0xb0] sm:$0xff]
        %v2189 = vld [vmem:[%s3 + $0xb8] sm:$0xff]
        %v2190 = vld [vmem:[%s3 + $0xc0] sm:$0xff]
        %v2191 = vld [vmem:[%s3 + $0xc8] sm:$0xff]
        %v2192 = vld [vmem:[%s3 + $0xd0] sm:$0xff]
        %v2193 = vld [vmem:[%s3 + $0xd8] sm:$0xff]
        %v2194 = vld [vmem:[%s3 + $0xe0] sm:$0xff]
        %v2195 = vld [vmem:[%s3 + $0xe8] sm:$0xff]
        %v2196 = vld [vmem:[%s3 + $0xf0] sm:$0xff]
        %v2197 = vld [vmem:[%s3 + $0xf8] sm:$0xff]
        %v2198 = vpack.c.bf16 %v2103, %v2102
        %v2199 = vpack.c.bf16 %v2105, %v2104
        %v2200 = vpack.c.bf16 %v2107, %v2106
        %v2201 = vpack.c.bf16 %v2109, %v2108
        %v2202 = vpack.c.bf16 %v2111, %v2110
        %v2203 = vpack.c.bf16 %v2113, %v2112
        %v2204 = vpack.c.bf16 %v2115, %v2114
        %v2205 = vpack.c.bf16 %v2117, %v2116
        %v2206 = vpack.c.bf16 %v2119, %v2118
        %v2207 = vpack.c.bf16 %v2121, %v2120
        %v2208 = vpack.c.bf16 %v2123, %v2122
        %v2209 = vpack.c.bf16 %v2125, %v2124
        %v2210 = vpack.c.bf16 %v2127, %v2126
        %v2211 = vpack.c.bf16 %v2129, %v2128
        %v2212 = vpack.c.bf16 %v2131, %v2130
        %v2213 = vpack.c.bf16 %v2133, %v2132
        %v2214 = vpack.c.bf16 %v2135, %v2134
        %v2215 = vpack.c.bf16 %v2137, %v2136
        %v2216 = vpack.c.bf16 %v2139, %v2138
        %v2217 = vpack.c.bf16 %v2141, %v2140
        %v2218 = vpack.c.bf16 %v2143, %v2142
        %v2219 = vpack.c.bf16 %v2145, %v2144
        %v2220 = vpack.c.bf16 %v2147, %v2146
        %v2221 = vpack.c.bf16 %v2149, %v2148
        %v2222 = vpack.c.bf16 %v2151, %v2150
        %v2223 = vpack.c.bf16 %v2153, %v2152
        %v2224 = vpack.c.bf16 %v2155, %v2154
        %v2225 = vpack.c.bf16 %v2157, %v2156
        %v2226 = vpack.c.bf16 %v2159, %v2158
        %v2227 = vpack.c.bf16 %v2161, %v2160
        %v2228 = vpack.c.bf16 %v2163, %v2162
        %v2229 = vpack.c.bf16 %v2165, %v2164
        %v2230 = vld [vmem:[%s4] sm:$0xff]
        %v2231 = vld [vmem:[%s4 + $0x8] sm:$0xff]
        %v2232 = vld [vmem:[%s4 + $0x10] sm:$0xff]
        %v2233 = vld [vmem:[%s4 + $0x18] sm:$0xff]
        %v2234 = vld [vmem:[%s4 + $0x20] sm:$0xff]
        %v2235 = vld [vmem:[%s4 + $0x28] sm:$0xff]
        %v2236 = vld [vmem:[%s4 + $0x30] sm:$0xff]
        %v2237 = vld [vmem:[%s4 + $0x38] sm:$0xff]
        %v2238 = vld [vmem:[%s4 + $0x40] sm:$0xff]
        %v2239 = vld [vmem:[%s4 + $0x48] sm:$0xff]
        %v2240 = vld [vmem:[%s4 + $0x50] sm:$0xff]
        %v2241 = vld [vmem:[%s4 + $0x58] sm:$0xff]
        %v2242 = vld [vmem:[%s4 + $0x60] sm:$0xff]
        %v2243 = vld [vmem:[%s4 + $0x68] sm:$0xff]
        %v2244 = vld [vmem:[%s4 + $0x70] sm:$0xff]
        %v2245 = vld [vmem:[%s4 + $0x78] sm:$0xff]
        %2247 = vset.pattern.permute.xlu0 0
        %2248 = vperm.xlu0 %2247, %v2230
        %v2249 = vpop.permute.xlu0 %2248
        %2252 = vset.pattern.permute.xlu0 0
        %2253 = vperm.xlu0 %2252, %v2231
        %v2254 = vpop.permute.xlu0 %2253
        %2257 = vset.pattern.permute.xlu0 0
        %2258 = vperm.xlu0 %2257, %v2232
        %v2259 = vpop.permute.xlu0 %2258
        %2262 = vset.pattern.permute.xlu0 0
        %2263 = vperm.xlu0 %2262, %v2233
        %v2264 = vpop.permute.xlu0 %2263
        %2267 = vset.pattern.permute.xlu0 0
        %2268 = vperm.xlu0 %2267, %v2234
        %v2269 = vpop.permute.xlu0 %2268
        %2272 = vset.pattern.permute.xlu0 0
        %2273 = vperm.xlu0 %2272, %v2235
        %v2274 = vpop.permute.xlu0 %2273
        %2277 = vset.pattern.permute.xlu0 0
        %2278 = vperm.xlu0 %2277, %v2236
        %v2279 = vpop.permute.xlu0 %2278
        %2282 = vset.pattern.permute.xlu0 0
        %2283 = vperm.xlu0 %2282, %v2237
        %v2284 = vpop.permute.xlu0 %2283
        %2287 = vset.pattern.permute.xlu0 0
        %2288 = vperm.xlu0 %2287, %v2238
        %v2289 = vpop.permute.xlu0 %2288
        %2292 = vset.pattern.permute.xlu0 0
        %2293 = vperm.xlu0 %2292, %v2239
        %v2294 = vpop.permute.xlu0 %2293
        %2297 = vset.pattern.permute.xlu0 0
        %2298 = vperm.xlu0 %2297, %v2240
        %v2299 = vpop.permute.xlu0 %2298
        %2302 = vset.pattern.permute.xlu0 0
        %2303 = vperm.xlu0 %2302, %v2241
        %v2304 = vpop.permute.xlu0 %2303
        %2307 = vset.pattern.permute.xlu0 0
        %2308 = vperm.xlu0 %2307, %v2242
        %v2309 = vpop.permute.xlu0 %2308
        %2312 = vset.pattern.permute.xlu0 0
        %2313 = vperm.xlu0 %2312, %v2243
        %v2314 = vpop.permute.xlu0 %2313
        %2317 = vset.pattern.permute.xlu0 0
        %2318 = vperm.xlu0 %2317, %v2244
        %v2319 = vpop.permute.xlu0 %2318
        %2322 = vset.pattern.permute.xlu0 0
        %2323 = vperm.xlu0 %2322, %v2245
        %v2324 = vpop.permute.xlu0 %2323
        %v2358 = vunpack.c.l.b16 %v2166
        %v2359 = vunpack.c.h.b16 %v2166
        %v2360 = vunpack.c.l.b16 %v2167
        %v2361 = vunpack.c.h.b16 %v2167
        %v2362 = vunpack.c.l.b16 %v2168
        %v2363 = vunpack.c.h.b16 %v2168
        %v2364 = vunpack.c.l.b16 %v2169
        %v2365 = vunpack.c.h.b16 %v2169
        %v2366 = vunpack.c.l.b16 %v2170
        %v2367 = vunpack.c.h.b16 %v2170
        %v2368 = vunpack.c.l.b16 %v2171
        %v2369 = vunpack.c.h.b16 %v2171
        %v2370 = vunpack.c.l.b16 %v2172
        %v2371 = vunpack.c.h.b16 %v2172
        %v2372 = vunpack.c.l.b16 %v2173
        %v2373 = vunpack.c.h.b16 %v2173
        %v2374 = vunpack.c.l.b16 %v2174
        %v2375 = vunpack.c.h.b16 %v2174
        %v2376 = vunpack.c.l.b16 %v2175
        %v2377 = vunpack.c.h.b16 %v2175
        %v2378 = vunpack.c.l.b16 %v2176
        %v2379 = vunpack.c.h.b16 %v2176
        %v2380 = vunpack.c.l.b16 %v2177
        %v2381 = vunpack.c.h.b16 %v2177
        %v2382 = vunpack.c.l.b16 %v2178
        %v2383 = vunpack.c.h.b16 %v2178
        %v2384 = vunpack.c.l.b16 %v2179
        %v2385 = vunpack.c.h.b16 %v2179
        %v2386 = vunpack.c.l.b16 %v2180
        %v2387 = vunpack.c.h.b16 %v2180
        %v2388 = vunpack.c.l.b16 %v2181
        %v2389 = vunpack.c.h.b16 %v2181
        %v2390 = vunpack.c.l.b16 %v2182
        %v2391 = vunpack.c.h.b16 %v2182
        %v2392 = vunpack.c.l.b16 %v2183
        %v2393 = vunpack.c.h.b16 %v2183
        %v2394 = vunpack.c.l.b16 %v2184
        %v2395 = vunpack.c.h.b16 %v2184
        %v2396 = vunpack.c.l.b16 %v2185
        %v2397 = vunpack.c.h.b16 %v2185
        %v2398 = vunpack.c.l.b16 %v2186
        %v2399 = vunpack.c.h.b16 %v2186
        %v2400 = vunpack.c.l.b16 %v2187
        %v2401 = vunpack.c.h.b16 %v2187
        %v2402 = vunpack.c.l.b16 %v2188
        %v2403 = vunpack.c.h.b16 %v2188
        %v2404 = vunpack.c.l.b16 %v2189
        %v2405 = vunpack.c.h.b16 %v2189
        %v2406 = vunpack.c.l.b16 %v2190
        %v2407 = vunpack.c.h.b16 %v2190
        %v2408 = vunpack.c.l.b16 %v2191
        %v2409 = vunpack.c.h.b16 %v2191
        %v2410 = vunpack.c.l.b16 %v2192
        %v2411 = vunpack.c.h.b16 %v2192
        %v2412 = vunpack.c.l.b16 %v2193
        %v2413 = vunpack.c.h.b16 %v2193
        %v2414 = vunpack.c.l.b16 %v2194
        %v2415 = vunpack.c.h.b16 %v2194
        %v2416 = vunpack.c.l.b16 %v2195
        %v2417 = vunpack.c.h.b16 %v2195
        %v2418 = vunpack.c.l.b16 %v2196
        %v2419 = vunpack.c.h.b16 %v2196
        %v2420 = vunpack.c.l.b16 %v2197
        %v2421 = vunpack.c.h.b16 %v2197
        %v2422 = vpack.c.b16 %v2362, %v2358
        %v2423 = vpack.c.b16 %v2363, %v2359
        %v2424 = vpack.c.b16 %v2364, %v2360
        %v2425 = vpack.c.b16 %v2365, %v2361
        %v2426 = vpack.c.b16 %v2370, %v2366
        %v2427 = vpack.c.b16 %v2371, %v2367
        %v2428 = vpack.c.b16 %v2372, %v2368
        %v2429 = vpack.c.b16 %v2373, %v2369
        %v2430 = vpack.c.b16 %v2378, %v2374
        %v2431 = vpack.c.b16 %v2379, %v2375
        %v2432 = vpack.c.b16 %v2380, %v2376
        %v2433 = vpack.c.b16 %v2381, %v2377
        %v2434 = vpack.c.b16 %v2386, %v2382
        %v2435 = vpack.c.b16 %v2387, %v2383
        %v2436 = vpack.c.b16 %v2388, %v2384
        %v2437 = vpack.c.b16 %v2389, %v2385
        %v2438 = vpack.c.b16 %v2394, %v2390
        %v2439 = vpack.c.b16 %v2395, %v2391
        %v2440 = vpack.c.b16 %v2396, %v2392
        %v2441 = vpack.c.b16 %v2397, %v2393
        %v2442 = vpack.c.b16 %v2402, %v2398
        %v2443 = vpack.c.b16 %v2403, %v2399
        %v2444 = vpack.c.b16 %v2404, %v2400
        %v2445 = vpack.c.b16 %v2405, %v2401
        %v2446 = vpack.c.b16 %v2410, %v2406
        %v2447 = vpack.c.b16 %v2411, %v2407
        %v2448 = vpack.c.b16 %v2412, %v2408
        %v2449 = vpack.c.b16 %v2413, %v2409
        %v2450 = vpack.c.b16 %v2418, %v2414
        %v2451 = vpack.c.b16 %v2419, %v2415
        %v2452 = vpack.c.b16 %v2420, %v2416
        %v2453 = vpack.c.b16 %v2421, %v2417
        %2486 = vmatprep.subr.bf16.mxu0 0
        %2487 = vmatpush1.bf16.msra.mxu0 %v2198
        %2488 = vmatprep.subr.bf16.mxu0 0
        %2489 = vmatpush1.bf16.msra.mxu0 %v2199
        %2490 = vmatprep.subr.bf16.mxu0 0
        %2491 = vmatpush1.bf16.msra.mxu0 %v2200
        %2492 = vmatprep.subr.bf16.mxu0 0
        %2493 = vmatpush1.bf16.msra.mxu0 %v2201
        %2494 = vmatprep.subr.bf16.mxu0 0
        %2495 = vmatpush1.bf16.msra.mxu0 %v2202
        %2496 = vmatprep.subr.bf16.mxu0 0
        %2497 = vmatpush1.bf16.msra.mxu0 %v2203
        %2498 = vmatprep.subr.bf16.mxu0 0
        %2499 = vmatpush1.bf16.msra.mxu0 %v2204
        %2500 = vmatprep.subr.bf16.mxu0 0
        %2501 = vmatpush1.bf16.msra.mxu0 %v2205
        %2502 = vmatprep.subr.bf16.mxu0 0
        %2503 = vmatpush1.bf16.msra.mxu0 %v2206
        %2504 = vmatprep.subr.bf16.mxu0 0
        %2505 = vmatpush1.bf16.msra.mxu0 %v2207
        %2506 = vmatprep.subr.bf16.mxu0 0
        %2507 = vmatpush1.bf16.msra.mxu0 %v2208
        %2508 = vmatprep.subr.bf16.mxu0 0
        %2509 = vmatpush1.bf16.msra.mxu0 %v2209
        %2510 = vmatprep.subr.bf16.mxu0 0
        %2511 = vmatpush1.bf16.msra.mxu0 %v2210
        %2512 = vmatprep.subr.bf16.mxu0 0
        %2513 = vmatpush1.bf16.msra.mxu0 %v2211
        %2514 = vmatprep.subr.bf16.mxu0 0
        %2515 = vmatpush1.bf16.msra.mxu0 %v2212
        %2516 = vmatprep.subr.bf16.mxu0 0
        %2517 = vmatpush1.bf16.msra.mxu0 %v2213
        %2518 = vmatprep.mubr.bf16.mxu0 %v2423
        %2519 = vmatmul.mubr.bf16.gmra.mrb[0].mxu0 %v2422
        %v2520 = vpop.f32.mrb[0].mxu0
        %v2521 = vadd.f32 %v2249, %v2520
        %v2522 = vpop.f32.mrb[0].mxu0
        %v2523 = vpop.f32.mrb[0].mxu0
        %v2524 = vadd.f32 %v2254, %v2523
        %v2525 = vpop.f32.mrb[0].mxu0
        %2526 = vmatprep.mubr.bf16.mxu0 %v2427
        %2527 = vmatmul.mubr.bf16.gmra.mrb[0].mxu0 %v2426
        %v2528 = vpop.f32.mrb[0].mxu0
        %v2529 = vadd.f32 %v2259, %v2528
        %v2530 = vpop.f32.mrb[0].mxu0
        %v2531 = vpop.f32.mrb[0].mxu0
        %v2532 = vadd.f32 %v2264, %v2531
        %v2533 = vpop.f32.mrb[0].mxu0
        %2534 = vmatprep.mubr.bf16.mxu0 %v2431
        %2535 = vmatmul.mubr.bf16.gmra.mrb[0].mxu0 %v2430
        %v2536 = vpop.f32.mrb[0].mxu0
        %v2537 = vadd.f32 %v2269, %v2536
        %v2538 = vpop.f32.mrb[0].mxu0
        %v2539 = vpop.f32.mrb[0].mxu0
        %v2540 = vadd.f32 %v2274, %v2539
        %v2541 = vpop.f32.mrb[0].mxu0
        %2542 = vmatprep.mubr.bf16.mxu0 %v2435
        %2543 = vmatmul.mubr.bf16.gmra.mrb[0].mxu0 %v2434
        %v2544 = vpop.f32.mrb[0].mxu0
        %v2545 = vadd.f32 %v2279, %v2544
        %v2546 = vpop.f32.mrb[0].mxu0
        %v2547 = vpop.f32.mrb[0].mxu0
        %v2548 = vadd.f32 %v2284, %v2547
        %v2549 = vpop.f32.mrb[0].mxu0
        %2550 = vmatprep.mubr.bf16.mxu0 %v2439
        %2551 = vmatmul.mubr.bf16.gmra.mrb[0].mxu0 %v2438
        %v2552 = vpop.f32.mrb[0].mxu0
        %v2553 = vadd.f32 %v2289, %v2552
        %v2554 = vpop.f32.mrb[0].mxu0
        %v2555 = vpop.f32.mrb[0].mxu0
        %v2556 = vadd.f32 %v2294, %v2555
        %v2557 = vpop.f32.mrb[0].mxu0
        %2558 = vmatprep.mubr.bf16.mxu0 %v2443
        %2559 = vmatmul.mubr.bf16.gmra.mrb[0].mxu0 %v2442
        %v2560 = vpop.f32.mrb[0].mxu0
        %v2561 = vadd.f32 %v2299, %v2560
        %v2562 = vpop.f32.mrb[0].mxu0
        %v2563 = vpop.f32.mrb[0].mxu0
        %v2564 = vadd.f32 %v2304, %v2563
        %v2565 = vpop.f32.mrb[0].mxu0
        %2566 = vmatprep.mubr.bf16.mxu0 %v2447
        %2567 = vmatmul.mubr.bf16.gmra.mrb[0].mxu0 %v2446
        %v2568 = vpop.f32.mrb[0].mxu0
        %v2569 = vadd.f32 %v2309, %v2568
        %v2570 = vpop.f32.mrb[0].mxu0
        %v2571 = vpop.f32.mrb[0].mxu0
        %v2572 = vadd.f32 %v2314, %v2571
        %v2573 = vpop.f32.mrb[0].mxu0
        %2574 = vmatprep.mubr.bf16.mxu0 %v2451
        %2575 = vmatmul.mubr.bf16.gmra.mrb[0].mxu0 %v2450
        %v2576 = vpop.f32.mrb[0].mxu0
        %v2577 = vadd.f32 %v2319, %v2576
        %v2578 = vpop.f32.mrb[0].mxu0
        %v2579 = vpop.f32.mrb[0].mxu0
        %v2580 = vadd.f32 %v2324, %v2579
        %v2581 = vpop.f32.mrb[0].mxu0
        %2582 = vdwg.mxu0
        %2583 = vmatprep.subr.bf16.mxu0 0
        %2584 = vmatpush1.bf16.msra.mxu0 %v2214
        %2585 = vmatprep.subr.bf16.mxu0 0
        %2586 = vmatpush1.bf16.msra.mxu0 %v2215
        %2587 = vmatprep.subr.bf16.mxu0 0
        %2588 = vmatpush1.bf16.msra.mxu0 %v2216
        %2589 = vmatprep.subr.bf16.mxu0 0
        %2590 = vmatpush1.bf16.msra.mxu0 %v2217
        %2591 = vmatprep.subr.bf16.mxu0 0
        %2592 = vmatpush1.bf16.msra.mxu0 %v2218
        %2593 = vmatprep.subr.bf16.mxu0 0
        %2594 = vmatpush1.bf16.msra.mxu0 %v2219
        %2595 = vmatprep.subr.bf16.mxu0 0
        %2596 = vmatpush1.bf16.msra.mxu0 %v2220
        %2597 = vmatprep.subr.bf16.mxu0 0
        %2598 = vmatpush1.bf16.msra.mxu0 %v2221
        %2599 = vmatprep.subr.bf16.mxu0 0
        %2600 = vmatpush1.bf16.msra.mxu0 %v2222
        %2601 = vmatprep.subr.bf16.mxu0 0
        %2602 = vmatpush1.bf16.msra.mxu0 %v2223
        %2603 = vmatprep.subr.bf16.mxu0 0
        %2604 = vmatpush1.bf16.msra.mxu0 %v2224
        %2605 = vmatprep.subr.bf16.mxu0 0
        %2606 = vmatpush1.bf16.msra.mxu0 %v2225
        %2607 = vmatprep.subr.bf16.mxu0 0
        %2608 = vmatpush1.bf16.msra.mxu0 %v2226
        %2609 = vmatprep.subr.bf16.mxu0 0
        %2610 = vmatpush1.bf16.msra.mxu0 %v2227
        %2611 = vmatprep.subr.bf16.mxu0 0
        %2612 = vmatpush1.bf16.msra.mxu0 %v2228
        %2613 = vmatprep.subr.bf16.mxu0 0
        %2614 = vmatpush1.bf16.msra.mxu0 %v2229
        %2615 = vmatprep.mubr.bf16.mxu0 %v2425
        %2616 = vmatmul.mubr.bf16.gmra.mrb[0].mxu0 %v2424
        %v2617 = vpop.f32.mrb[0].mxu0
        %v2618 = vadd.f32 %v2521, %v2617
        %v2619 = vpop.f32.mrb[0].mxu0
        %v2620 = vpop.f32.mrb[0].mxu0
        %v2621 = vadd.f32 %v2524, %v2620
        %v2622 = vpop.f32.mrb[0].mxu0
        %2623 = vmatprep.mubr.bf16.mxu0 %v2429
        %2624 = vmatmul.mubr.bf16.gmra.mrb[0].mxu0 %v2428
        %v2625 = vpop.f32.mrb[0].mxu0
        %v2626 = vadd.f32 %v2529, %v2625
        %v2627 = vpop.f32.mrb[0].mxu0
        %v2628 = vpop.f32.mrb[0].mxu0
        %v2629 = vadd.f32 %v2532, %v2628
        %v2630 = vpop.f32.mrb[0].mxu0
        %2631 = vmatprep.mubr.bf16.mxu0 %v2433
        %2632 = vmatmul.mubr.bf16.gmra.mrb[0].mxu0 %v2432
        %v2633 = vpop.f32.mrb[0].mxu0
        %v2634 = vadd.f32 %v2537, %v2633
        %v2635 = vpop.f32.mrb[0].mxu0
        %v2636 = vpop.f32.mrb[0].mxu0
        %v2637 = vadd.f32 %v2540, %v2636
        %v2638 = vpop.f32.mrb[0].mxu0
        %2639 = vmatprep.mubr.bf16.mxu0 %v2437
        %2640 = vmatmul.mubr.bf16.gmra.mrb[0].mxu0 %v2436
        %v2641 = vpop.f32.mrb[0].mxu0
        %v2642 = vadd.f32 %v2545, %v2641
        %v2643 = vpop.f32.mrb[0].mxu0
        %v2644 = vpop.f32.mrb[0].mxu0
        %v2645 = vadd.f32 %v2548, %v2644
        %v2646 = vpop.f32.mrb[0].mxu0
        %2647 = vmatprep.mubr.bf16.mxu0 %v2441
        %2648 = vmatmul.mubr.bf16.gmra.mrb[0].mxu0 %v2440
        %v2649 = vpop.f32.mrb[0].mxu0
        %v2650 = vadd.f32 %v2553, %v2649
        %v2651 = vpop.f32.mrb[0].mxu0
        %v2652 = vpop.f32.mrb[0].mxu0
        %v2653 = vadd.f32 %v2556, %v2652
        %v2654 = vpop.f32.mrb[0].mxu0
        %2655 = vmatprep.mubr.bf16.mxu0 %v2445
        %2656 = vmatmul.mubr.bf16.gmra.mrb[0].mxu0 %v2444
        %v2657 = vpop.f32.mrb[0].mxu0
        %v2658 = vadd.f32 %v2561, %v2657
        %v2659 = vpop.f32.mrb[0].mxu0
        %v2660 = vpop.f32.mrb[0].mxu0
        %v2661 = vadd.f32 %v2564, %v2660
        %v2662 = vpop.f32.mrb[0].mxu0
        %2663 = vmatprep.mubr.bf16.mxu0 %v2449
        %2664 = vmatmul.mubr.bf16.gmra.mrb[0].mxu0 %v2448
        %v2665 = vpop.f32.mrb[0].mxu0
        %v2666 = vadd.f32 %v2569, %v2665
        %v2667 = vpop.f32.mrb[0].mxu0
        %v2668 = vpop.f32.mrb[0].mxu0
        %v2669 = vadd.f32 %v2572, %v2668
        %v2670 = vpop.f32.mrb[0].mxu0
        %2671 = vmatprep.mubr.bf16.mxu0 %v2453
        %2672 = vmatmul.mubr.bf16.gmra.mrb[0].mxu0 %v2452
        %v2673 = vpop.f32.mrb[0].mxu0
        %v2674 = vadd.f32 %v2577, %v2673
        %v2675 = vpop.f32.mrb[0].mxu0
        %v2676 = vpop.f32.mrb[0].mxu0
        %v2677 = vadd.f32 %v2580, %v2676
        %v2678 = vpop.f32.mrb[0].mxu0
        %2679 = vdwg.mxu0
        %2680 = vst [vmem:[%s274] sm:$0xff] %v2618
        %2681 = vst [vmem:[%s274 + $0x8] sm:$0xff] %v2621
        %2682 = vst [vmem:[%s274 + $0x10] sm:$0xff] %v2626
        %2683 = vst [vmem:[%s274 + $0x18] sm:$0xff] %v2629
        %2684 = vst [vmem:[%s274 + $0x20] sm:$0xff] %v2634
        %2685 = vst [vmem:[%s274 + $0x28] sm:$0xff] %v2637
        %2686 = vst [vmem:[%s274 + $0x30] sm:$0xff] %v2642
        %2687 = vst [vmem:[%s274 + $0x38] sm:$0xff] %v2645
        %2688 = vst [vmem:[%s274 + $0x40] sm:$0xff] %v2650
        %2689 = vst [vmem:[%s274 + $0x48] sm:$0xff] %v2653
        %2690 = vst [vmem:[%s274 + $0x50] sm:$0xff] %v2658
        %2691 = vst [vmem:[%s274 + $0x58] sm:$0xff] %v2661
        %2692 = vst [vmem:[%s274 + $0x60] sm:$0xff] %v2666
        %2693 = vst [vmem:[%s274 + $0x68] sm:$0xff] %v2669
        %2694 = vst [vmem:[%s274 + $0x70] sm:$0xff] %v2674
        %2695 = vst [vmem:[%s274 + $0x78] sm:$0xff] %v2677
        %s2696 = sand.u32 %s157, 1
        %s2697 = scalar_lea.sflag [#allocation4], %s2696
        %s2698 = sand.u32 %s157, 1
        %s2699 = smul.addr %s2698, 128
        %s2700 = scalar_lea.vmem [#allocation7], %s2699
        // Predicated region
        $region49: #{tpu_custom_call.1} parent=39 // pred_check
          %p2701 = pneg %p167
        $region50: #{tpu_custom_call.1} parent=39 // pred_check_branch
          %2703 = sbr.rel (%p2701) target = $region52
        $region51: #{tpu_custom_call.1} parent=39 // pred_region
          %s2705 = ssub.s32 2048, 2048
          %2706 = vsyncadd %s2697, %s2705
          %s2707 = smul.addr %s27, 16
          %s2708 = sadd.s32 %s28, %s2707
          %s2709 = smul.addr %s2708, 128
          %s2710 = scalar_lea.hbm %s5, %s2709
          %s2711 = sshll.u32 %s2700, 4
          %s2712 = int_to_ptr.vmem [resolvable:$true] %s2711
          %2717 = dma.vmem_to_hbm [thread:$0]  %s2712, 2048, %s2710, %s2697, 128, 128, 8
        $region52: #{tpu_custom_call.1} parent=39 // pred_fallthru
          _
      $region40: #{tpu_custom_call.1} parent=5 // pred_fallthru
        _
      %p2718 = scmp.le.s32.totalorder 2, %s18
      // Predicated region
      $region53: #{tpu_custom_call.1} parent=5 // pred_check
        %p2719 = pneg %p2718
      $region54: #{tpu_custom_call.1} parent=5 // pred_check_branch
        %2721 = sbr.rel (%p2719) target = $region56
      $region55: #{tpu_custom_call.1} parent=5 // pred_region
        %s2722 = ssub.s32 %s18, 2
        // Predicated region
        $region57: #{tpu_custom_call.1} parent=55 // pred_check
          %p2723 = pneg %p173
        $region58: #{tpu_custom_call.1} parent=55 // pred_check_branch
          %2725 = sbr.rel (%p2723) target = $region60
        $region59: #{tpu_custom_call.1} parent=55 // pred_region
          %s2726 = sand.u32 %s158, 1
          %s2727 = scalar_lea.sflag [#allocation4], %s2726
          %s2728 = sand.u32 %s158, 1
          %s2729 = smul.addr %s2728, 128
          %s2730 = scalar_lea.vmem [#allocation7], %s2729
          %2731 = dma.done %s2727, 2048
        $region60: #{tpu_custom_call.1} parent=55 // pred_fallthru
          _
      $region56: #{tpu_custom_call.1} parent=5 // pred_fallthru
        _
    $region6: #{tpu_custom_call.1} parent=1 // loop_footer
      %s22 = sadd.s32 1, %s18
    $region7: #{tpu_custom_call.1} parent=1 // loop_footer_branch
      %17 = sbr.rel target = $region3
    $region8: #{tpu_custom_call.1} parent=1 // loop_exit
      _
    %2732 = vsyncpa [#allocation3], 1
    %s2733 = scalar_lea.sflag [#allocation3], 1
    %2734 = vsyncpa %s2733, 1
    %2735 = vsyncpa [#allocation6], 1
    %2736 = vsyncpa [#allocation4], 1
    %s2737 = scalar_lea.sflag [#allocation4], 1
    %2738 = vsyncpa %s2737, 1

</llo_original>
